<compile_context>
chip_gen: v7x
topology: tpu7x:2x2x1
jax: 0.10.0
libtpu: 0.0.40
codegen_flags: <defaults>
</compile_context>

<pallas_src>
import functools
import math

import jax
import jax.numpy as jnp
from jax.experimental import pallas as pl
from jax.experimental.pallas import tpu as pltpu

LEAKY_SLOPE = 0.2
LN_EPS = 1e-5


# ---------------------------------------------------------------------------
# In-kernel building block: head-averaged additive-attention probabilities.
#   e[h,i,j] = LeakyReLU( s_src[i,h] + s_dst[j,h] )
#   P        = (1/H) * sum_h softmax_j(e[h])
# All H heads processed in one stacked (H, K, K) pass (single LeakyReLU /
# row-max / exp / sum), summed over the head axis in one reduction.
# ---------------------------------------------------------------------------
def _mean_head_probs(s, num_heads):
    # s: (K, 2H) raw scores; columns [:H] = "source" half, [H:] = "dest" half.
    H = num_heads
    s_src = s[:, :H].T                                     # (H, K)
    s_dst = s[:, H:].T                                     # (H, K)
    e = s_src[:, :, None] + s_dst[:, None, :]              # (H, K, K)
    e = jnp.where(e > 0, e, LEAKY_SLOPE * e)               # LeakyReLU(0.2)
    e = e - jnp.max(e, axis=-1, keepdims=True)             # stable softmax over j
    p = jnp.exp(e)
    p = p / jnp.sum(p, axis=-1, keepdims=True)             # exact divide
    return jnp.sum(p, axis=0) * (1.0 / H)                  # (K, K)


def fused_kernel(y0_ref, wt_ref, selfw_ref, ws_ref, bias_ref, gamma_ref,
                 beta_ref, xres_ref, out_ref, *, num_heads):
    F = gamma_ref.shape[0]
    NT = gamma_ref.shape[1]
    T = y0_ref.shape[1]
    N = NT // T

    y = y0_ref[0]                                                        # (T, N*F)

    # ---- temporal attention -------------------------------------------------
    s_t = jnp.dot(y, wt_ref[...], preferred_element_type=jnp.float32)   # (T, 2H)
    p_t = _mean_head_probs(s_t, num_heads)                               # (T, T)
    h = jnp.dot(p_t, y, preferred_element_type=jnp.float32)              # (T, N*F)

    # ---- feature matmul + relayout to per-feature node rows, in VMEM --------
    # selfw[n*F+f, g*N+n] = fw[f, g]  (feature weights folded into the
    # relayout selection).  Fine for tiny N*F; for large N*F this O(N^2 F^2)
    # weight should be replaced by per-node (T,F)@(F,F) contractions -- it is
    # the first thing to blow v7x's 64 MiB VMEM under double-buffering.
    u = jnp.dot(h, selfw_ref[...], preferred_element_type=jnp.float32)  # (T, F*N)
    v3 = u.T.reshape(F, N, T)                                            # (F, N, T): [g, n, t]

    # ---- spatial attention over nodes (batched over features) ---------------
    s3 = jnp.einsum('fnt,ftc->fnc', v3, ws_ref[...],
                    preferred_element_type=jnp.float32)                  # (F, N, 2H)
    p_s = _mean_head_probs(jnp.sum(s3, axis=0), num_heads)               # (N, N)
    p_s3 = jnp.broadcast_to(p_s[None], (F, N, N))
    a3 = jnp.einsum('fnm,fmt->fnt', p_s3, v3,
                    preferred_element_type=jnp.float32)                  # (F, N, T)

    # ---- lane-dense (F, N*T) slab: out2[g, n*T+t] ----------------------------
    # Built with static slices + one lane concat (no minor-dim reshapes).
    out2 = jnp.concatenate([a3[:, n, :] for n in range(N)], axis=1)      # (F, N*T)
    out2 = out2 + bias_ref[...]                                          # + bias[t]

    # ---- one-pass LayerNorm over the (F,N,T) slab + tanh + residual ---------
    inv_cnt = 1.0 / float(F * NT)
    mu = jnp.sum(out2) * inv_cnt
    ex2 = jnp.sum(out2 * out2) * inv_cnt
    inv_std = jax.lax.rsqrt(ex2 - mu * mu + LN_EPS)
    yn = (out2 - mu) * inv_std * gamma_ref[...] + beta_ref[...]
    # TODO(synk): nn.Dropout(p=0.3) is identity in eval mode; no RNG mask applied.
    out_ref[0] = jnp.tanh(yn) + xres_ref[0]                              # one full-lane store


# ---------------------------------------------------------------------------
# Wrapper: parameter plumbing + single pallas_call.
# ---------------------------------------------------------------------------
def residual_graph_convolution_forward(x, params, num_heads):
    B, F_, N, T = x.shape
    NF, FT, NT = N * F_, F_ * T, N * T
    H = num_heads

    # Temporal attention weights (H, 2*N*F, 1) -> fused (N*F, 2H): [wa | wb].
    wt = params["att_tem"][:, :, 0]
    wt_cat = jnp.concatenate([wt[:, :NF].T, wt[:, NF:].T], axis=1)

    # Spatial attention weights (H, 2*T*F, 1): original flat row index t*F+g;
    # the kernel consumes them per-feature as ws3[g, t, c].
    ws = params["att_sp"][:, :, 0]
    wsa = ws[:, :FT].T.reshape(T, F_, H)
    wsb = ws[:, FT:].T.reshape(T, F_, H)
    ws3 = jnp.transpose(jnp.concatenate([wsa, wsb], axis=2), (1, 0, 2))  # (F, T, 2H)

    # Feature weights folded into the (T,(N,F)) -> ((F,N),T) relayout selection:
    #   selfw[n*F+f, g*N+n] = fw[f, g]
    selfw = jnp.einsum("fg,nm->nfgm", params["fw"],
                       jnp.eye(N, dtype=jnp.float32)).reshape(NF, F_ * N)

    bias_nt = jnp.tile(params["bias"], N)[None, :]      # (1, N*T): [0, n*T+t] = bias[t]
    gamma = params["ln_w"].reshape(F_, NT)              # lane-dense LN affine
    beta = params["ln_b"].reshape(F_, NT)
    xres = x.reshape(B, F_, NT)                         # lane-dense residual (free reshape)

    # Only XLA-side layout glue: NCHW -> temporal (T, N*F) slabs.  The second
    # (flat) read of x is ~8 KiB/batch -- cheaper than an in-kernel 3-way
    # transpose of the residual.
    y0 = jnp.transpose(x, (0, 3, 2, 1)).reshape(B, T, NF)

    flops = int(B * (2 * T * NF * 2 * H          # temporal scores
                     + 2 * T * T * NF            # temporal apply
                     + 2 * T * NF * F_ * N       # feature matmul (folded)
                     + 2 * F_ * N * T * 2 * H    # spatial scores
                     + 2 * F_ * N * N * T        # spatial apply
                     + 10 * F_ * NT))            # LN / tanh / residual tail
    transcendentals = int(B * (H * T * T + H * N * N + F_ * NT))
    bytes_accessed = int(4 * (y0.size + wt_cat.size + selfw.size + ws3.size
                              + bias_nt.size + gamma.size + beta.size
                              + xres.size + B * F_ * NT))

    out_flat = pl.pallas_call(
        functools.partial(fused_kernel, num_heads=H),
        out_shape=jax.ShapeDtypeStruct((B, F_, NT), jnp.float32),
        grid=(B,),
        in_specs=[
            pl.BlockSpec((1, T, NF), lambda b: (b, 0, 0)),        # y0
            pl.BlockSpec((NF, 2 * H), lambda b: (0, 0)),          # wt_cat
            pl.BlockSpec((NF, F_ * N), lambda b: (0, 0)),         # selfw
            pl.BlockSpec((F_, T, 2 * H), lambda b: (0, 0, 0)),    # ws3
            pl.BlockSpec((1, NT), lambda b: (0, 0)),              # bias (lane-dense)
            pl.BlockSpec((F_, NT), lambda b: (0, 0)),             # LN gamma
            pl.BlockSpec((F_, NT), lambda b: (0, 0)),             # LN beta
            pl.BlockSpec((1, F_, NT), lambda b: (b, 0, 0)),       # residual (x, flat)
        ],
        out_specs=pl.BlockSpec((1, F_, NT), lambda b: (b, 0, 0)),
        compiler_params=pltpu.CompilerParams(dimension_semantics=("parallel",)),
        cost_estimate=pl.CostEstimate(flops=flops,
                                      transcendentals=transcendentals,
                                      bytes_accessed=bytes_accessed),
    )(y0, wt_cat, selfw, ws3, bias_nt, gamma, beta, xres)

    return out_flat.reshape(B, F_, N, T)


# ---------------------------------------------------------------------------
# Pure-JAX reference (mirrors the PyTorch forward) for a correctness check.
# ---------------------------------------------------------------------------
def ref_forward(x, params, num_heads):
    B, F_, N, T = x.shape

    def attn(y, w):  # y: (B, K, Fp), w: (H, 2*Fp, 1)
        Bb, K, Fp = y.shape
        rep = jnp.repeat(y, K, axis=1)
        alt = jnp.tile(y, (1, K, 1))
        comb = jnp.concatenate([rep, alt], axis=2).reshape(Bb, K, K, 2 * Fp)
        outs = []
        for h in range(num_heads):
            e = jnp.matmul(comb, w[h])[..., 0]
            e = jnp.where(e > 0, e, LEAKY_SLOPE * e)
            a = jax.nn.softmax(e, axis=2)
            outs.append(jnp.matmul(a, y))
        return sum(outs) / num_heads

    y = jnp.transpose(x, (0, 3, 2, 1)).reshape(B, T, N * F_)
    y = attn(y, params["att_tem"]).reshape(B, T, N, F_)
    y = jnp.matmul(y, params["fw"])
    y = jnp.transpose(y, (0, 2, 1, 3)).reshape(B, N, T * F_)
    y = attn(y, params["att_sp"]).reshape(B, N, T, F_)
    y = jnp.transpose(y, (0, 3, 1, 2)) + params["bias"]                # (B, F, N, T)
    mu = jnp.mean(y, axis=(1, 2, 3), keepdims=True)
    var = jnp.mean((y - mu) ** 2, axis=(1, 2, 3), keepdims=True)
    y = (y - mu) / jnp.sqrt(var + LN_EPS)
    y = y * params["ln_w"] + params["ln_b"]
    return jnp.tanh(y) + x


if __name__ == "__main__":
    # Small, forward-consistent shapes: features=4, node_n=8, seq_len=16, heads=4.
    # (N*T = 128 -> the whole LN/tanh/residual tail is a single lane-dense slab.)
    B, F_, N, T, H = 2, 4, 8, 16, 4

    key = jax.random.PRNGKey(0)
    kx, k1, k2, k3, k4 = jax.random.split(key, 5)

    stdv = 1.0 / math.sqrt(F_)  # matches reset_parameters (out_features = F_)
    params = {
        "att_tem": jax.random.uniform(k1, (H, N * F_ * 2, 1), jnp.float32, -stdv, stdv),
        "fw":      jax.random.uniform(k2, (F_, F_), jnp.float32, -stdv, stdv),
        "att_sp":  jax.random.uniform(k3, (H, T * F_ * 2, 1), jnp.float32, -stdv, stdv),
        "bias":    jax.random.uniform(k4, (T,), jnp.float32, -stdv, stdv),
        "ln_w":    jnp.ones((F_, N, T), jnp.float32),   # LayerNorm affine init
        "ln_b":    jnp.zeros((F_, N, T), jnp.float32),
    }

    x = jax.random.normal(kx, (B, F_, N, T), jnp.float32)

    fwd = jax.jit(residual_graph_convolution_forward, static_argnums=2)
    out = jax.block_until_ready(fwd(x, params, H))
    ref = jax.block_until_ready(ref_forward(x, params, H))

    max_err = float(jnp.max(jnp.abs(out - ref)))
    assert out.shape == (B, F_, N, T)
    assert max_err < 2e-3, f"mismatch vs reference: {max_err}"

    print("KERNEL_OK")
</pallas_src>

<mosaic_0001>
module attributes {stable_mosaic.version = 11 : i64} {
  func.func @fused_kernel(%arg0: i32, %arg1: memref<1x16x32xf32, #tpu.memory_space<vmem>>, %arg2: memref<32x8xf32, #tpu.memory_space<vmem>>, %arg3: memref<32x32xf32, #tpu.memory_space<vmem>>, %arg4: memref<4x16x8xf32, #tpu.memory_space<vmem>>, %arg5: memref<1x128xf32, #tpu.memory_space<vmem>>, %arg6: memref<4x128xf32, #tpu.memory_space<vmem>>, %arg7: memref<4x128xf32, #tpu.memory_space<vmem>>, %arg8: memref<1x4x128xf32, #tpu.memory_space<vmem>>, %arg9: memref<1x4x128xf32, #tpu.memory_space<vmem>>) attributes {dimension_semantics = [#tpu.dimension_semantics<parallel>], iteration_bounds = array<i64: 2>, scalar_prefetch = 0 : i64, scratch_operands = 0 : i64, tpu.core_type = #tpu.core_type<tc>, window_params = [{transform_indices = @transform_0, window_bounds = array<i64: 1, 16, 32>}, {pipeline_mode = #tpu.pipeline_mode<synchronous>, transform_indices = @transform_1, window_bounds = array<i64: 32, 8>}, {pipeline_mode = #tpu.pipeline_mode<synchronous>, transform_indices = @transform_2, window_bounds = array<i64: 32, 32>}, {pipeline_mode = #tpu.pipeline_mode<synchronous>, transform_indices = @transform_3, window_bounds = array<i64: 4, 16, 8>}, {pipeline_mode = #tpu.pipeline_mode<synchronous>, transform_indices = @transform_4, window_bounds = array<i64: 1, 128>}, {pipeline_mode = #tpu.pipeline_mode<synchronous>, transform_indices = @transform_5, window_bounds = array<i64: 4, 128>}, {pipeline_mode = #tpu.pipeline_mode<synchronous>, transform_indices = @transform_6, window_bounds = array<i64: 4, 128>}, {transform_indices = @transform_7, window_bounds = array<i64: 1, 4, 128>}, {transform_indices = @transform_8, window_bounds = array<i64: 1, 4, 128>}]} {
    %c0 = arith.constant 0 : index
    %c0_0 = arith.constant 0 : index
    %c0_1 = arith.constant 0 : index
    %0 = vector.load %arg1[%c0, %c0_0, %c0_1] : memref<1x16x32xf32, #tpu.memory_space<vmem>>, vector<1x16x32xf32>
    %1 = vector.shape_cast %0 : vector<1x16x32xf32> to vector<16x32xf32>
    %c0_2 = arith.constant 0 : index
    %c0_3 = arith.constant 0 : index
    %2 = vector.load %arg2[%c0_2, %c0_3] : memref<32x8xf32, #tpu.memory_space<vmem>>, vector<32x8xf32>
    %cst = arith.constant dense<0.000000e+00> : vector<16x8xf32>
    %3 = tpu.matmul %1, %2, %cst {dimension_numbers = #tpu.dot_dimension_numbers<[1], [0], [0], [1], [0, 0, 1, 1], [], []>} : vector<16x32xf32>, vector<32x8xf32>, vector<16x8xf32> -> vector<16x8xf32>
    %4 = vector.extract_strided_slice %3 {offsets = [0, 0], sizes = [16, 4], strides = [1, 1]} : vector<16x8xf32> to vector<16x4xf32>
    %5 = tpu.transpose %4, [1, 0] : vector<16x4xf32> -> vector<4x16xf32>
    %6 = vector.extract_strided_slice %3 {offsets = [0, 4], sizes = [16, 4], strides = [1, 1]} : vector<16x8xf32> to vector<16x4xf32>
    %7 = tpu.transpose %6, [1, 0] : vector<16x4xf32> -> vector<4x16xf32>
    %8 = vector.shape_cast %5 : vector<4x16xf32> to vector<4x16x1xf32>
    %9 = vector.shape_cast %7 : vector<4x16xf32> to vector<4x1x16xf32>
    %10 = vector.broadcast %8 : vector<4x16x1xf32> to vector<4x16x16xf32>
    %11 = vector.broadcast %9 : vector<4x1x16xf32> to vector<4x16x16xf32>
    %12 = arith.addf %10, %11 : vector<4x16x16xf32>
    %cst_4 = arith.constant 0.000000e+00 : f32
    %13 = vector.broadcast %cst_4 : f32 to vector<4x16x16xf32>
    %14 = arith.cmpf ogt, %12, %13 : vector<4x16x16xf32>
    %cst_5 = arith.constant 2.000000e-01 : f32
    %15 = vector.broadcast %cst_5 : f32 to vector<4x16x16xf32>
    %16 = arith.mulf %15, %12 : vector<4x16x16xf32>
    %17 = arith.select %14, %12, %16 : vector<4x16x16xi1>, vector<4x16x16xf32>
    %cst_6 = arith.constant dense<0xFF800000> : vector<4x16xf32>
    %18 = vector.multi_reduction <maximumf>, %17, %cst_6 [2] : vector<4x16x16xf32> to vector<4x16xf32>
    %19 = vector.shape_cast %18 : vector<4x16xf32> to vector<4x16x1xf32>
    %20 = vector.broadcast %19 : vector<4x16x1xf32> to vector<4x16x16xf32>
    %21 = arith.subf %17, %20 : vector<4x16x16xf32>
    %22 = math.exp %21 : vector<4x16x16xf32>
    %cst_7 = arith.constant dense<0.000000e+00> : vector<4x16xf32>
    %23 = vector.multi_reduction <add>, %22, %cst_7 [2] : vector<4x16x16xf32> to vector<4x16xf32>
    %24 = vector.shape_cast %23 : vector<4x16xf32> to vector<4x16x1xf32>
    %25 = vector.broadcast %24 : vector<4x16x1xf32> to vector<4x16x16xf32>
    %26 = arith.divf %22, %25 : vector<4x16x16xf32>
    %cst_8 = arith.constant dense<0.000000e+00> : vector<16x16xf32>
    %27 = vector.multi_reduction <add>, %26, %cst_8 [0] : vector<4x16x16xf32> to vector<16x16xf32>
    %cst_9 = arith.constant 2.500000e-01 : f32
    %28 = vector.broadcast %cst_9 : f32 to vector<16x16xf32>
    %29 = arith.mulf %27, %28 : vector<16x16xf32>
    %cst_10 = arith.constant dense<0.000000e+00> : vector<16x32xf32>
    %30 = tpu.matmul %29, %1, %cst_10 {dimension_numbers = #tpu.dot_dimension_numbers<[1], [0], [0], [1], [0, 0, 1, 1], [], []>} : vector<16x16xf32>, vector<16x32xf32>, vector<16x32xf32> -> vector<16x32xf32>
    %c0_11 = arith.constant 0 : index
    %c0_12 = arith.constant 0 : index
    %31 = vector.load %arg3[%c0_11, %c0_12] : memref<32x32xf32, #tpu.memory_space<vmem>>, vector<32x32xf32>
    %cst_13 = arith.constant dense<0.000000e+00> : vector<16x32xf32>
    %32 = tpu.matmul %30, %31, %cst_13 {dimension_numbers = #tpu.dot_dimension_numbers<[1], [0], [0], [1], [0, 0, 1, 1], [], []>} : vector<16x32xf32>, vector<32x32xf32>, vector<16x32xf32> -> vector<16x32xf32>
    %33 = tpu.transpose %32, [1, 0] : vector<16x32xf32> -> vector<32x16xf32>
    %34 = vector.shape_cast %33 : vector<32x16xf32> to vector<4x8x16xf32>
    %c0_14 = arith.constant 0 : index
    %c0_15 = arith.constant 0 : index
    %c0_16 = arith.constant 0 : index
    %35 = vector.load %arg4[%c0_14, %c0_15, %c0_16] : memref<4x16x8xf32, #tpu.memory_space<vmem>>, vector<4x16x8xf32>
    "tpu.trace_start"() <{level = 10 : i32, message = "fnt,ftc->fnc"}> : () -> ()
    %cst_17 = arith.constant dense<0.000000e+00> : vector<4x8x8xf32>
    %36 = tpu.matmul %34, %35, %cst_17 {dimension_numbers = #tpu.dot_dimension_numbers<[2], [1], [1], [2], [0, 0, 0, 1, 1, 2], [0], [0]>} : vector<4x8x16xf32>, vector<4x16x8xf32>, vector<4x8x8xf32> -> vector<4x8x8xf32>
    "tpu.trace_stop"() : () -> ()
    %cst_18 = arith.constant dense<0.000000e+00> : vector<8x8xf32>
    %37 = vector.multi_reduction <add>, %36, %cst_18 [0] : vector<4x8x8xf32> to vector<8x8xf32>
    %38 = vector.extract_strided_slice %37 {offsets = [0, 0], sizes = [8, 4], strides = [1, 1]} : vector<8x8xf32> to vector<8x4xf32>
    %39 = tpu.transpose %38, [1, 0] : vector<8x4xf32> -> vector<4x8xf32>
    %40 = vector.extract_strided_slice %37 {offsets = [0, 4], sizes = [8, 4], strides = [1, 1]} : vector<8x8xf32> to vector<8x4xf32>
    %41 = tpu.transpose %40, [1, 0] : vector<8x4xf32> -> vector<4x8xf32>
    %42 = vector.shape_cast %39 : vector<4x8xf32> to vector<4x8x1xf32>
    %43 = vector.shape_cast %41 : vector<4x8xf32> to vector<4x1x8xf32>
    %44 = vector.broadcast %42 : vector<4x8x1xf32> to vector<4x8x8xf32>
    %45 = vector.broadcast %43 : vector<4x1x8xf32> to vector<4x8x8xf32>
    %46 = arith.addf %44, %45 : vector<4x8x8xf32>
    %cst_19 = arith.constant 0.000000e+00 : f32
    %47 = vector.broadcast %cst_19 : f32 to vector<4x8x8xf32>
    %48 = arith.cmpf ogt, %46, %47 : vector<4x8x8xf32>
    %cst_20 = arith.constant 2.000000e-01 : f32
    %49 = vector.broadcast %cst_20 : f32 to vector<4x8x8xf32>
    %50 = arith.mulf %49, %46 : vector<4x8x8xf32>
    %51 = arith.select %48, %46, %50 : vector<4x8x8xi1>, vector<4x8x8xf32>
    %cst_21 = arith.constant dense<0xFF800000> : vector<4x8xf32>
    %52 = vector.multi_reduction <maximumf>, %51, %cst_21 [2] : vector<4x8x8xf32> to vector<4x8xf32>
    %53 = vector.shape_cast %52 : vector<4x8xf32> to vector<4x8x1xf32>
    %54 = vector.broadcast %53 : vector<4x8x1xf32> to vector<4x8x8xf32>
    %55 = arith.subf %51, %54 : vector<4x8x8xf32>
    %56 = math.exp %55 : vector<4x8x8xf32>
    %cst_22 = arith.constant dense<0.000000e+00> : vector<4x8xf32>
    %57 = vector.multi_reduction <add>, %56, %cst_22 [2] : vector<4x8x8xf32> to vector<4x8xf32>
    %58 = vector.shape_cast %57 : vector<4x8xf32> to vector<4x8x1xf32>
    %59 = vector.broadcast %58 : vector<4x8x1xf32> to vector<4x8x8xf32>
    %60 = arith.divf %56, %59 : vector<4x8x8xf32>
    %cst_23 = arith.constant dense<0.000000e+00> : vector<8x8xf32>
    %61 = vector.multi_reduction <add>, %60, %cst_23 [0] : vector<4x8x8xf32> to vector<8x8xf32>
    %cst_24 = arith.constant 2.500000e-01 : f32
    %62 = vector.broadcast %cst_24 : f32 to vector<8x8xf32>
    %63 = arith.mulf %61, %62 : vector<8x8xf32>
    %64 = vector.shape_cast %63 : vector<8x8xf32> to vector<1x8x8xf32>
    %65 = vector.shape_cast %64 : vector<1x8x8xf32> to vector<1x8x8xf32>
    %66 = vector.broadcast %65 : vector<1x8x8xf32> to vector<4x8x8xf32>
    "tpu.trace_start"() <{level = 10 : i32, message = "fnm,fmt->fnt"}> : () -> ()
    %cst_25 = arith.constant dense<0.000000e+00> : vector<4x8x16xf32>
    %67 = tpu.matmul %66, %34, %cst_25 {dimension_numbers = #tpu.dot_dimension_numbers<[2], [1], [1], [2], [0, 0, 0, 1, 1, 2], [0], [0]>} : vector<4x8x8xf32>, vector<4x8x16xf32>, vector<4x8x16xf32> -> vector<4x8x16xf32>
    "tpu.trace_stop"() : () -> ()
    %68 = vector.extract_strided_slice %67 {offsets = [0, 0, 0], sizes = [4, 1, 16], strides = [1, 1, 1]} : vector<4x8x16xf32> to vector<4x1x16xf32>
    %69 = vector.shape_cast %68 : vector<4x1x16xf32> to vector<4x16xf32>
    %70 = vector.extract_strided_slice %67 {offsets = [0, 1, 0], sizes = [4, 1, 16], strides = [1, 1, 1]} : vector<4x8x16xf32> to vector<4x1x16xf32>
    %71 = vector.shape_cast %70 : vector<4x1x16xf32> to vector<4x16xf32>
    %72 = vector.extract_strided_slice %67 {offsets = [0, 2, 0], sizes = [4, 1, 16], strides = [1, 1, 1]} : vector<4x8x16xf32> to vector<4x1x16xf32>
    %73 = vector.shape_cast %72 : vector<4x1x16xf32> to vector<4x16xf32>
    %74 = vector.extract_strided_slice %67 {offsets = [0, 3, 0], sizes = [4, 1, 16], strides = [1, 1, 1]} : vector<4x8x16xf32> to vector<4x1x16xf32>
    %75 = vector.shape_cast %74 : vector<4x1x16xf32> to vector<4x16xf32>
    %76 = vector.extract_strided_slice %67 {offsets = [0, 4, 0], sizes = [4, 1, 16], strides = [1, 1, 1]} : vector<4x8x16xf32> to vector<4x1x16xf32>
    %77 = vector.shape_cast %76 : vector<4x1x16xf32> to vector<4x16xf32>
    %78 = vector.extract_strided_slice %67 {offsets = [0, 5, 0], sizes = [4, 1, 16], strides = [1, 1, 1]} : vector<4x8x16xf32> to vector<4x1x16xf32>
    %79 = vector.shape_cast %78 : vector<4x1x16xf32> to vector<4x16xf32>
    %80 = vector.extract_strided_slice %67 {offsets = [0, 6, 0], sizes = [4, 1, 16], strides = [1, 1, 1]} : vector<4x8x16xf32> to vector<4x1x16xf32>
    %81 = vector.shape_cast %80 : vector<4x1x16xf32> to vector<4x16xf32>
    %82 = vector.extract_strided_slice %67 {offsets = [0, 7, 0], sizes = [4, 1, 16], strides = [1, 1, 1]} : vector<4x8x16xf32> to vector<4x1x16xf32>
    %83 = vector.shape_cast %82 : vector<4x1x16xf32> to vector<4x16xf32>
    %84 = tpu.concatenate %69, %71, %73, %75, %77, %79, %81, %83 in 1 : vector<4x16xf32>, vector<4x16xf32>, vector<4x16xf32>, vector<4x16xf32>, vector<4x16xf32>, vector<4x16xf32>, vector<4x16xf32>, vector<4x16xf32> -> vector<4x128xf32>
    %c0_26 = arith.constant 0 : index
    %c0_27 = arith.constant 0 : index
    %85 = vector.load %arg5[%c0_26, %c0_27] : memref<1x128xf32, #tpu.memory_space<vmem>>, vector<1x128xf32>
    %86 = vector.broadcast %85 : vector<1x128xf32> to vector<4x128xf32>
    %87 = arith.addf %84, %86 : vector<4x128xf32>
    %88 = vector.shape_cast %87 : vector<4x128xf32> to vector<1x4x128xf32>
    %cst_28 = arith.constant dense<0.000000e+00> : vector<1xf32>
    %89 = vector.multi_reduction <add>, %88, %cst_28 [1, 2] : vector<1x4x128xf32> to vector<1xf32>
    %90 = vector.shape_cast %89 : vector<1xf32> to vector<1x1x1xf32>
    %91 = vector.extract %90[0, 0, 0] : f32 from vector<1x1x1xf32>
    %cst_29 = arith.constant 0.001953125 : f32
    %92 = arith.mulf %91, %cst_29 : f32
    %93 = arith.mulf %87, %87 : vector<4x128xf32>
    %94 = vector.shape_cast %93 : vector<4x128xf32> to vector<1x4x128xf32>
    %cst_30 = arith.constant dense<0.000000e+00> : vector<1xf32>
    %95 = vector.multi_reduction <add>, %94, %cst_30 [1, 2] : vector<1x4x128xf32> to vector<1xf32>
    %96 = vector.shape_cast %95 : vector<1xf32> to vector<1x1x1xf32>
    %97 = vector.extract %96[0, 0, 0] : f32 from vector<1x1x1xf32>
    %cst_31 = arith.constant 0.001953125 : f32
    %98 = arith.mulf %97, %cst_31 : f32
    %99 = arith.mulf %92, %92 : f32
    %100 = arith.subf %98, %99 : f32
    %cst_32 = arith.constant 9.99999974E-6 : f32
    %101 = arith.addf %100, %cst_32 : f32
    %102 = math.rsqrt %101 : f32
    %103 = vector.broadcast %92 : f32 to vector<4x128xf32>
    %104 = arith.subf %87, %103 : vector<4x128xf32>
    %105 = vector.broadcast %102 : f32 to vector<4x128xf32>
    %106 = arith.mulf %104, %105 : vector<4x128xf32>
    %c0_33 = arith.constant 0 : index
    %c0_34 = arith.constant 0 : index
    %107 = vector.load %arg6[%c0_33, %c0_34] : memref<4x128xf32, #tpu.memory_space<vmem>>, vector<4x128xf32>
    %108 = arith.mulf %106, %107 : vector<4x128xf32>
    %c0_35 = arith.constant 0 : index
    %c0_36 = arith.constant 0 : index
    %109 = vector.load %arg7[%c0_35, %c0_36] : memref<4x128xf32, #tpu.memory_space<vmem>>, vector<4x128xf32>
    %110 = arith.addf %108, %109 : vector<4x128xf32>
    %111 = math.tanh %110 : vector<4x128xf32>
    %c0_37 = arith.constant 0 : index
    %c0_38 = arith.constant 0 : index
    %c0_39 = arith.constant 0 : index
    %112 = vector.load %arg8[%c0_37, %c0_38, %c0_39] : memref<1x4x128xf32, #tpu.memory_space<vmem>>, vector<1x4x128xf32>
    %113 = vector.shape_cast %112 : vector<1x4x128xf32> to vector<4x128xf32>
    %114 = arith.addf %111, %113 : vector<4x128xf32>
    %c0_40 = arith.constant 0 : index
    %c0_41 = arith.constant 0 : index
    %c0_42 = arith.constant 0 : index
    %115 = vector.load %arg9[%c0_40, %c0_41, %c0_42] : memref<1x4x128xf32, #tpu.memory_space<vmem>>, vector<1x4x128xf32>
    %116 = vector.shape_cast %115 : vector<1x4x128xf32> to vector<4x128xf32>
    %117 = vector.shape_cast %114 : vector<4x128xf32> to vector<1x4x128xf32>
    tpu.vector_store %arg9[%c0_40, %c0_41, %c0_42], %117 {strides = array<i32>} : memref<1x4x128xf32, #tpu.memory_space<vmem>>, vector<1x4x128xf32>,
    return
  }
  func.func @transform_0(%arg0: i32) -> (i32, i32, i32) {
    %c0_i32 = arith.constant 0 : i32
    %c0_i32_0 = arith.constant 0 : i32
    %c0_i32_1 = arith.constant 0 : i32
    return %arg0, %c0_i32, %c0_i32_0 : i32, i32, i32
  }
  func.func @transform_1(%arg0: i32) -> (i32, i32) {
    %c0_i32 = arith.constant 0 : i32
    %c0_i32_0 = arith.constant 0 : i32
    %c0_i32_1 = arith.constant 0 : i32
    return %c0_i32, %c0_i32_0 : i32, i32
  }
  func.func @transform_2(%arg0: i32) -> (i32, i32) {
    %c0_i32 = arith.constant 0 : i32
    %c0_i32_0 = arith.constant 0 : i32
    %c0_i32_1 = arith.constant 0 : i32
    return %c0_i32, %c0_i32_0 : i32, i32
  }
  func.func @transform_3(%arg0: i32) -> (i32, i32, i32) {
    %c0_i32 = arith.constant 0 : i32
    %c0_i32_0 = arith.constant 0 : i32
    %c0_i32_1 = arith.constant 0 : i32
    %c0_i32_2 = arith.constant 0 : i32
    return %c0_i32, %c0_i32_0, %c0_i32_1 : i32, i32, i32
  }
  func.func @transform_4(%arg0: i32) -> (i32, i32) {
    %c0_i32 = arith.constant 0 : i32
    %c0_i32_0 = arith.constant 0 : i32
    %c0_i32_1 = arith.constant 0 : i32
    return %c0_i32, %c0_i32_0 : i32, i32
  }
  func.func @transform_5(%arg0: i32) -> (i32, i32) {
    %c0_i32 = arith.constant 0 : i32
    %c0_i32_0 = arith.constant 0 : i32
    %c0_i32_1 = arith.constant 0 : i32
    return %c0_i32, %c0_i32_0 : i32, i32
  }
  func.func @transform_6(%arg0: i32) -> (i32, i32) {
    %c0_i32 = arith.constant 0 : i32
    %c0_i32_0 = arith.constant 0 : i32
    %c0_i32_1 = arith.constant 0 : i32
    return %c0_i32, %c0_i32_0 : i32, i32
  }
  func.func @transform_7(%arg0: i32) -> (i32, i32, i32) {
    %c0_i32 = arith.constant 0 : i32
    %c0_i32_0 = arith.constant 0 : i32
    %c0_i32_1 = arith.constant 0 : i32
    return %arg0, %c0_i32, %c0_i32_0 : i32, i32, i32
  }
  func.func @transform_8(%arg0: i32) -> (i32, i32, i32) {
    %c0_i32 = arith.constant 0 : i32
    %c0_i32_0 = arith.constant 0 : i32
    %c0_i32_1 = arith.constant 0 : i32
    return %arg0, %c0_i32, %c0_i32_0 : i32, i32, i32
  }
}

</mosaic_0001>

<llo_original>
// kernel: tile.8
$region0: #{tile.8}
  #allocation0 [shape = 's32[1]{0}', space=sflag, size = 0x4, scoped, tag = 'scoped memory for tile.8']
  %s0 = inlined_call_operand.vmem [shape: f32[16], index: 0, kind: input, shape index: {}]
  %s1 = inlined_call_operand.vmem [shape: f32[8,16], index: 1, kind: output, shape index: {}]
  // Predicated region
  $region2: #{tile.8} parent=0 // pred_check
    _
  $region3: #{tile.8} parent=0 // pred_check_branch
    %3 = sbr.rel (0) target = $region5
  $region4: #{tile.8} parent=0 // pred_region
    _
  $region5: #{tile.8} parent=0 // pred_fallthru
    _
  %v4 = vld [vmem:[%s0] ss:$0 sm:$0xff]
  %5 = vst [vmem:[%s1] sm:$0xff] %v4

// kernel: tile.9
$region0: #{tile.9}
  %s0 = inlined_call_operand.vmem [shape: f32[8,16], index: 0, kind: input, shape index: {}]
  %s1 = inlined_call_operand.vmem [shape: f32[1,128], index: 1, kind: output, shape index: {}]
  $region1: #{tile.9} parent=0
    #allocation0 [shape = 'u8[4096]{0}', space=vmem, size = 0x1000, scoped, tag = 'scoped mem for output reshape']
    %v2 = vld [vmem:[%s0] sm:$0x1]
    %vm3 = vcmask 130048
    %4 = vst.msk [vmem:[#allocation0] sm:$0x1] %vm3, %v2
    %s5 = scalar_lea.vmem %s0, 7
    %v6 = vld [vmem:[%s5] sm:$0x1]
    %7 = vrot.lane.b32.xlu0 %v6, 112
    %v8 = vpop.permute.xlu0 %7
    %vm9 = vcmask 1048448
    %10 = vst.msk [vmem:[#allocation0] sm:$0x1] %vm9, %v8
    %s11 = scalar_lea.vmem %s0, 6
    %v12 = vld [vmem:[%s11] sm:$0x1]
    %13 = vrot.lane.b32.xlu0 %v12, 96
    %v14 = vpop.permute.xlu0 %13
    %vm15 = vcmask 917248
    %16 = vst.msk [vmem:[#allocation0] sm:$0x1] %vm15, %v14
    %s17 = scalar_lea.vmem %s0, 5
    %v18 = vld [vmem:[%s17] sm:$0x1]
    %19 = vrot.lane.b32.xlu0 %v18, 80
    %v20 = vpop.permute.xlu0 %19
    %vm21 = vcmask 786048
    %22 = vst.msk [vmem:[#allocation0] sm:$0x1] %vm21, %v20
    %s23 = scalar_lea.vmem %s0, 4
    %v24 = vld [vmem:[%s23] sm:$0x1]
    %25 = vrot.lane.b32.xlu0 %v24, 64
    %v26 = vpop.permute.xlu0 %25
    %vm27 = vcmask 654848
    %28 = vst.msk [vmem:[#allocation0] sm:$0x1] %vm27, %v26
    %s29 = scalar_lea.vmem %s0, 3
    %v30 = vld [vmem:[%s29] sm:$0x1]
    %31 = vrot.lane.b32.xlu0 %v30, 48
    %v32 = vpop.permute.xlu0 %31
    %vm33 = vcmask 523648
    %34 = vst.msk [vmem:[#allocation0] sm:$0x1] %vm33, %v32
    %s35 = scalar_lea.vmem %s0, 2
    %v36 = vld [vmem:[%s35] sm:$0x1]
    %37 = vrot.lane.b32.xlu0 %v36, 32
    %v38 = vpop.permute.xlu0 %37
    %vm39 = vcmask 392448
    %40 = vst.msk [vmem:[#allocation0] sm:$0x1] %vm39, %v38
    %s41 = scalar_lea.vmem %s0, 1
    %v42 = vld [vmem:[%s41] sm:$0x1]
    %43 = vrot.lane.b32.xlu0 %v42, 16
    %v44 = vpop.permute.xlu0 %43
    %vm45 = vcmask 261248
    %46 = vst.msk [vmem:[#allocation0] sm:$0x1] %vm45, %v44
    %s48 = sshllo.u32 0, 1
    %v50 = vld [vmem:[#allocation0] sm:%s48]
    %s51 = sshllo.u32 0, 1
    %52 = vst [vmem:[%s1] sm:%s51] %v50

// kernel: residual_graph_convolution_forward.1
$region0: #{residual_graph_convolution_forward.1}
  #allocation0 [shape = 'u32[]', space=smem, size = 0x4, offset = 0x4, fixed_abs, tag = 'smem constant byte address 0x4 - core index']
  #allocation1 [shape = 'u32[144,128]{1,0:T(1,128)}', space=vmem, size = 0x12000, scoped, tag = 'internal scratch']
  %s0 = inlined_call_operand.vmem [shape: f32[2,16,32], index: 0, kind: input, shape index: {}]
  %s1 = inlined_call_operand.vmem [shape: f32[32,8], index: 1, kind: input, shape index: {}]
  %s2 = inlined_call_operand.vmem [shape: f32[32,32], index: 2, kind: input, shape index: {}]
  %s3 = inlined_call_operand.vmem [shape: f32[4,16,8], index: 3, kind: input, shape index: {}]
  %s4 = inlined_call_operand.vmem [shape: f32[1,128], index: 4, kind: input, shape index: {}]
  %s5 = inlined_call_operand.vmem [shape: f32[4,128], index: 5, kind: input, shape index: {}]
  %s6 = inlined_call_operand.vmem [shape: f32[4,128], index: 6, kind: input, shape index: {}]
  %s7 = inlined_call_operand.vmem [shape: f32[2,4,128], index: 7, kind: input, shape index: {}]
  %s8 = inlined_call_operand.vmem [shape: f32[2,4,128], index: 8, kind: output, shape index: {}]
  %s9 = sld [smem:[#allocation0]]
  $region65: #{residual_graph_convolution_forward.1} parent=0
    _
  %s11 = ssub.s32 1, %s9
  %s12 = scalar_select 0, %s11, %s9
  loop: start=0, step=1, limit=4
  $region2: #{residual_graph_convolution_forward.1} parent=0 // loop_pre_header
    _
  $region3: #{residual_graph_convolution_forward.1} parent=0 // loop_header
    %s14 = sphi 0, %s18
    %p15 = scmp.ge.s32.totalorder %s14, 4
    %s24 = sphi 0, %s26
    %s27 = sphi 0, %s24
    %s28 = sphi 0, %s27
    %s44 = sphi 0, %s28
    %s48 = sphi 0, %s48
    %s50 = sphi 0, %s48
    %s51 = sphi 0, %s50
    %s65 = sphi 0, %s51
    %s69 = sphi 0, %s69
    %s71 = sphi 0, %s69
    %s72 = sphi 0, %s71
    %s86 = sphi 0, %s72
    %s90 = sphi 0, %s90
    %s92 = sphi 0, %s90
    %s93 = sphi 0, %s92
    %s107 = sphi 0, %s93
    %s111 = sphi 0, %s111
    %s113 = sphi 0, %s111
    %s114 = sphi 0, %s113
    %s128 = sphi 0, %s114
    %s132 = sphi 0, %s132
    %s134 = sphi 0, %s132
    %s135 = sphi 0, %s134
    %s149 = sphi 0, %s135
    %s153 = sphi 0, %s153
    %s155 = sphi 0, %s153
    %s156 = sphi 0, %s155
    %s170 = sphi 0, %s156
    %s176 = sphi 0, %s178
    %s179 = sphi 0, %s176
    %s180 = sphi 0, %s179
    %s196 = sphi 0, %s180
    %s202 = sphi 0, %s204
    %s205 = sphi 0, %s202
    %s206 = sphi 0, %s205
    %s222 = sphi 0, %s206
  $region4: #{residual_graph_convolution_forward.1} parent=0 // loop_header_branch
    %17 = sbr.rel (%p15) target = $region8
  $region5: #{residual_graph_convolution_forward.1} parent=0 // loop_body
    %s19 = ssub.s32 %s14, 1
    %s20 = ssub.s32 %s14, 2
    %s21 = sadd.s32 %s14, 1
    %s22 = ssub.s32 %s14, %s21
    %p23 = scmp.eq.s32.totalorder %s22, 0
    %s25 = sadd.s32 %s24, 1
    %s26 = scalar_select %p23, %s24, %s25
    %p29 = pneg %p23
    %p30 = scmp.eq.s32.totalorder %s14, 1
    %p31 = por %p29, %p30
    %p32 = scmp.ne.s32.totalorder %s24, %s27
    %p33 = scmp.eq.s32.totalorder %s14, 0
    %p34 = por %p32, %p33
    %p35 = scmp.ne.s32.totalorder %s24, %s27
    %p36 = scmp.eq.s32.totalorder %s19, 1
    %p37 = por %p35, %p36
    %p38 = scmp.ne.s32.totalorder %s27, %s28
    %p39 = scmp.eq.s32.totalorder %s19, 0
    %p40 = por %p38, %p39
    %p41 = scmp.ne.s32.totalorder %s27, %s28
    %p42 = scmp.eq.s32.totalorder %s20, 1
    %p43 = por %p41, %p42
    %p45 = scmp.ne.s32.totalorder %s28, %s44
    %p46 = scmp.eq.s32.totalorder %s20, 0
    %p47 = por %p45, %p46
    %s49 = sadd.s32 %s48, 1
    %p52 = scmp.eq.s32.totalorder %s14, 1
    %p53 = scmp.ne.s32.totalorder %s48, %s50
    %p54 = scmp.eq.s32.totalorder %s14, 0
    %p55 = por %p53, %p54
    %p56 = scmp.ne.s32.totalorder %s48, %s50
    %p57 = scmp.eq.s32.totalorder %s19, 1
    %p58 = por %p56, %p57
    %p59 = scmp.ne.s32.totalorder %s50, %s51
    %p60 = scmp.eq.s32.totalorder %s19, 0
    %p61 = por %p59, %p60
    %p62 = scmp.ne.s32.totalorder %s50, %s51
    %p63 = scmp.eq.s32.totalorder %s20, 1
    %p64 = por %p62, %p63
    %p66 = scmp.ne.s32.totalorder %s51, %s65
    %p67 = scmp.eq.s32.totalorder %s20, 0
    %p68 = por %p66, %p67
    %s70 = sadd.s32 %s69, 1
    %p73 = scmp.eq.s32.totalorder %s14, 1
    %p74 = scmp.ne.s32.totalorder %s69, %s71
    %p75 = scmp.eq.s32.totalorder %s14, 0
    %p76 = por %p74, %p75
    %p77 = scmp.ne.s32.totalorder %s69, %s71
    %p78 = scmp.eq.s32.totalorder %s19, 1
    %p79 = por %p77, %p78
    %p80 = scmp.ne.s32.totalorder %s71, %s72
    %p81 = scmp.eq.s32.totalorder %s19, 0
    %p82 = por %p80, %p81
    %p83 = scmp.ne.s32.totalorder %s71, %s72
    %p84 = scmp.eq.s32.totalorder %s20, 1
    %p85 = por %p83, %p84
    %p87 = scmp.ne.s32.totalorder %s72, %s86
    %p88 = scmp.eq.s32.totalorder %s20, 0
    %p89 = por %p87, %p88
    %s91 = sadd.s32 %s90, 1
    %p94 = scmp.eq.s32.totalorder %s14, 1
    %p95 = scmp.ne.s32.totalorder %s90, %s92
    %p96 = scmp.eq.s32.totalorder %s14, 0
    %p97 = por %p95, %p96
    %p98 = scmp.ne.s32.totalorder %s90, %s92
    %p99 = scmp.eq.s32.totalorder %s19, 1
    %p100 = por %p98, %p99
    %p101 = scmp.ne.s32.totalorder %s92, %s93
    %p102 = scmp.eq.s32.totalorder %s19, 0
    %p103 = por %p101, %p102
    %p104 = scmp.ne.s32.totalorder %s92, %s93
    %p105 = scmp.eq.s32.totalorder %s20, 1
    %p106 = por %p104, %p105
    %p108 = scmp.ne.s32.totalorder %s93, %s107
    %p109 = scmp.eq.s32.totalorder %s20, 0
    %p110 = por %p108, %p109
    %s112 = sadd.s32 %s111, 1
    %p115 = scmp.eq.s32.totalorder %s14, 1
    %p116 = scmp.ne.s32.totalorder %s111, %s113
    %p117 = scmp.eq.s32.totalorder %s14, 0
    %p118 = por %p116, %p117
    %p119 = scmp.ne.s32.totalorder %s111, %s113
    %p120 = scmp.eq.s32.totalorder %s19, 1
    %p121 = por %p119, %p120
    %p122 = scmp.ne.s32.totalorder %s113, %s114
    %p123 = scmp.eq.s32.totalorder %s19, 0
    %p124 = por %p122, %p123
    %p125 = scmp.ne.s32.totalorder %s113, %s114
    %p126 = scmp.eq.s32.totalorder %s20, 1
    %p127 = por %p125, %p126
    %p129 = scmp.ne.s32.totalorder %s114, %s128
    %p130 = scmp.eq.s32.totalorder %s20, 0
    %p131 = por %p129, %p130
    %s133 = sadd.s32 %s132, 1
    %p136 = scmp.eq.s32.totalorder %s14, 1
    %p137 = scmp.ne.s32.totalorder %s132, %s134
    %p138 = scmp.eq.s32.totalorder %s14, 0
    %p139 = por %p137, %p138
    %p140 = scmp.ne.s32.totalorder %s132, %s134
    %p141 = scmp.eq.s32.totalorder %s19, 1
    %p142 = por %p140, %p141
    %p143 = scmp.ne.s32.totalorder %s134, %s135
    %p144 = scmp.eq.s32.totalorder %s19, 0
    %p145 = por %p143, %p144
    %p146 = scmp.ne.s32.totalorder %s134, %s135
    %p147 = scmp.eq.s32.totalorder %s20, 1
    %p148 = por %p146, %p147
    %p150 = scmp.ne.s32.totalorder %s135, %s149
    %p151 = scmp.eq.s32.totalorder %s20, 0
    %p152 = por %p150, %p151
    %s154 = sadd.s32 %s153, 1
    %p157 = scmp.eq.s32.totalorder %s14, 1
    %p158 = scmp.ne.s32.totalorder %s153, %s155
    %p159 = scmp.eq.s32.totalorder %s14, 0
    %p160 = por %p158, %p159
    %p161 = scmp.ne.s32.totalorder %s153, %s155
    %p162 = scmp.eq.s32.totalorder %s19, 1
    %p163 = por %p161, %p162
    %p164 = scmp.ne.s32.totalorder %s155, %s156
    %p165 = scmp.eq.s32.totalorder %s19, 0
    %p166 = por %p164, %p165
    %p167 = scmp.ne.s32.totalorder %s155, %s156
    %p168 = scmp.eq.s32.totalorder %s20, 1
    %p169 = por %p167, %p168
    %p171 = scmp.ne.s32.totalorder %s156, %s170
    %p172 = scmp.eq.s32.totalorder %s20, 0
    %p173 = por %p171, %p172
    %s174 = ssub.s32 %s14, %s21
    %p175 = scmp.eq.s32.totalorder %s174, 0
    %s177 = sadd.s32 %s176, 1
    %s178 = scalar_select %p175, %s176, %s177
    %p181 = pneg %p175
    %p182 = scmp.eq.s32.totalorder %s14, 1
    %p183 = por %p181, %p182
    %p184 = scmp.ne.s32.totalorder %s176, %s179
    %p185 = scmp.eq.s32.totalorder %s14, 0
    %p186 = por %p184, %p185
    %p187 = scmp.ne.s32.totalorder %s176, %s179
    %p188 = scmp.eq.s32.totalorder %s19, 1
    %p189 = por %p187, %p188
    %p190 = scmp.ne.s32.totalorder %s179, %s180
    %p191 = scmp.eq.s32.totalorder %s19, 0
    %p192 = por %p190, %p191
    %p193 = scmp.ne.s32.totalorder %s179, %s180
    %p194 = scmp.eq.s32.totalorder %s20, 1
    %p195 = por %p193, %p194
    %p197 = scmp.ne.s32.totalorder %s180, %s196
    %p198 = scmp.eq.s32.totalorder %s20, 0
    %p199 = por %p197, %p198
    %s200 = ssub.s32 %s14, %s21
    %p201 = scmp.eq.s32.totalorder %s200, 0
    %s203 = sadd.s32 %s202, 1
    %s204 = scalar_select %p201, %s202, %s203
    %p207 = pneg %p201
    %p208 = scmp.eq.s32.totalorder %s14, 1
    %p209 = por %p207, %p208
    %p210 = scmp.ne.s32.totalorder %s202, %s205
    %p211 = scmp.eq.s32.totalorder %s14, 0
    %p212 = por %p210, %p211
    %p213 = scmp.ne.s32.totalorder %s202, %s205
    %p214 = scmp.eq.s32.totalorder %s19, 1
    %p215 = por %p213, %p214
    %p216 = scmp.ne.s32.totalorder %s205, %s206
    %p217 = scmp.eq.s32.totalorder %s19, 0
    %p218 = por %p216, %p217
    %p219 = scmp.ne.s32.totalorder %s205, %s206
    %p220 = scmp.eq.s32.totalorder %s20, 1
    %p221 = por %p219, %p220
    %p223 = scmp.ne.s32.totalorder %s206, %s222
    %p224 = scmp.eq.s32.totalorder %s20, 0
    %p225 = por %p223, %p224
    %p226 = scmp.le.s32.totalorder 1, %s14
    %p227 = scmp.lt.s32.totalorder %s14, 3
    %p228 = pnand %p226, %p227
    %p229 = pneg %p228
    // Predicated region
    $region9: #{residual_graph_convolution_forward.1} parent=5 // pred_check
      _
    $region10: #{residual_graph_convolution_forward.1} parent=5 // pred_check_branch
      %231 = sbr.rel (%p228) target = $region12
    $region11: #{residual_graph_convolution_forward.1} parent=5 // pred_region
      %s232 = ssub.s32 %s14, 1
      // Predicated region
      $region13: #{residual_graph_convolution_forward.1} parent=11 // pred_check
        %p233 = pneg %p61
      $region14: #{residual_graph_convolution_forward.1} parent=11 // pred_check_branch
        %235 = sbr.rel (%p233) target = $region16
      $region15: #{residual_graph_convolution_forward.1} parent=11 // pred_region
        _
      $region16: #{residual_graph_convolution_forward.1} parent=11 // pred_fallthru
        _
      // Predicated region
      $region17: #{residual_graph_convolution_forward.1} parent=11 // pred_check
        %p236 = pneg %p82
      $region18: #{residual_graph_convolution_forward.1} parent=11 // pred_check_branch
        %238 = sbr.rel (%p236) target = $region20
      $region19: #{residual_graph_convolution_forward.1} parent=11 // pred_region
        _
      $region20: #{residual_graph_convolution_forward.1} parent=11 // pred_fallthru
        _
      // Predicated region
      $region21: #{residual_graph_convolution_forward.1} parent=11 // pred_check
        %p239 = pneg %p103
      $region22: #{residual_graph_convolution_forward.1} parent=11 // pred_check_branch
        %241 = sbr.rel (%p239) target = $region24
      $region23: #{residual_graph_convolution_forward.1} parent=11 // pred_region
        _
      $region24: #{residual_graph_convolution_forward.1} parent=11 // pred_fallthru
        _
      // Predicated region
      $region25: #{residual_graph_convolution_forward.1} parent=11 // pred_check
        %p242 = pneg %p124
      $region26: #{residual_graph_convolution_forward.1} parent=11 // pred_check_branch
        %244 = sbr.rel (%p242) target = $region28
      $region27: #{residual_graph_convolution_forward.1} parent=11 // pred_region
        _
      $region28: #{residual_graph_convolution_forward.1} parent=11 // pred_fallthru
        _
      // Predicated region
      $region29: #{residual_graph_convolution_forward.1} parent=11 // pred_check
        %p245 = pneg %p145
      $region30: #{residual_graph_convolution_forward.1} parent=11 // pred_check_branch
        %247 = sbr.rel (%p245) target = $region32
      $region31: #{residual_graph_convolution_forward.1} parent=11 // pred_region
        _
      $region32: #{residual_graph_convolution_forward.1} parent=11 // pred_fallthru
        _
      // Predicated region
      $region33: #{residual_graph_convolution_forward.1} parent=11 // pred_check
        %p248 = pneg %p166
      $region34: #{residual_graph_convolution_forward.1} parent=11 // pred_check_branch
        %250 = sbr.rel (%p248) target = $region36
      $region35: #{residual_graph_convolution_forward.1} parent=11 // pred_region
        _
      $region36: #{residual_graph_convolution_forward.1} parent=11 // pred_fallthru
        _
    $region12: #{residual_graph_convolution_forward.1} parent=5 // pred_fallthru
      _
    %p251 = scmp.lt.s32.totalorder %s14, 2
    // Predicated region
    $region37: #{residual_graph_convolution_forward.1} parent=5 // pred_check
      %p252 = pneg %p251
    $region38: #{residual_graph_convolution_forward.1} parent=5 // pred_check_branch
      %254 = sbr.rel (%p252) target = $region40
    $region39: #{residual_graph_convolution_forward.1} parent=5 // pred_region
      // Predicated region
      $region41: #{residual_graph_convolution_forward.1} parent=39 // pred_check
        %p255 = pneg %p34
      $region42: #{residual_graph_convolution_forward.1} parent=39 // pred_check_branch
        %257 = sbr.rel (%p255) target = $region44
      $region43: #{residual_graph_convolution_forward.1} parent=39 // pred_region
        %p258 = scmp.lt.s32.totalorder %s14, 1
        %s259 = scalar_select %p258, %s14, 1
        %s260 = smul.addr %s259, 2
        %s261 = smul.addr %s260, 8
        %s262 = scalar_lea.vmem %s0, %s261
      $region44: #{residual_graph_convolution_forward.1} parent=39 // pred_fallthru
        _
      // Predicated region
      $region45: #{residual_graph_convolution_forward.1} parent=39 // pred_check
        %p263 = pneg %p186
      $region46: #{residual_graph_convolution_forward.1} parent=39 // pred_check_branch
        %265 = sbr.rel (%p263) target = $region48
      $region47: #{residual_graph_convolution_forward.1} parent=39 // pred_region
        %p266 = scmp.lt.s32.totalorder %s14, 1
        %s267 = scalar_select %p266, %s14, 1
        %s268 = smul.addr %s267, 4
        %s269 = scalar_lea.vmem %s7, %s268
      $region48: #{residual_graph_convolution_forward.1} parent=39 // pred_fallthru
        _
    $region40: #{residual_graph_convolution_forward.1} parent=5 // pred_fallthru
      _
    %p270 = scmp.le.s32.totalorder 1, %s14
    %p271 = scmp.lt.s32.totalorder %s14, 3
    %p272 = pnand %p270, %p271
    %p273 = pneg %p272
    // Predicated region
    $region49: #{residual_graph_convolution_forward.1} parent=5 // pred_check
      _
    $region50: #{residual_graph_convolution_forward.1} parent=5 // pred_check_branch
      %275 = sbr.rel (%p272) target = $region52
    $region51: #{residual_graph_convolution_forward.1} parent=5 // pred_region
      %s276 = ssub.s32 %s14, 1
      %p277 = scmp.lt.s32.totalorder %s19, 1
      %s278 = scalar_select %p277, %s19, 1
      %s279 = smul.addr %s278, 2
      %s280 = smul.addr %s279, 8
      %s281 = scalar_lea.vmem %s0, %s280
      %p282 = pneg %p40
      %p283 = pneg %p37
      %p284 = pneg %p61
      %p285 = pneg %p58
      %p286 = pneg %p82
      %p287 = pneg %p79
      %p288 = pneg %p103
      %p289 = pneg %p100
      %p290 = pneg %p124
      %p291 = pneg %p121
      %p292 = pneg %p145
      %p293 = pneg %p142
      %p294 = pneg %p166
      %p295 = pneg %p163
      %p296 = scmp.lt.s32.totalorder %s19, 1
      %s297 = scalar_select %p296, %s19, 1
      %s298 = smul.addr %s297, 4
      %s299 = scalar_lea.vmem %s7, %s298
      %p300 = pneg %p192
      %p301 = pneg %p189
      %p302 = pneg %p218
      %p303 = pneg %p215
      %p304 = scmp.lt.s32.totalorder %s19, 1
      %s305 = scalar_select %p304, %s19, 1
      %s306 = smul.addr %s305, 4
      %s307 = scalar_lea.vmem %s8, %s306
      %p308 = scmp.lt.s32.totalorder %s19, 1
      %s309 = scalar_select %p308, %s19, 1
      %s310 = smul.addr %s309, 2
      %s311 = smul.addr %s310, 8
      %s312 = scalar_lea.vmem %s0, %s311
      %p313 = scmp.lt.s32.totalorder %s19, 1
      %s314 = scalar_select %p313, %s19, 1
      %s315 = smul.addr %s314, 4
      %s316 = scalar_lea.vmem %s7, %s315
      %p317 = scmp.lt.s32.totalorder %s19, 1
      %s318 = scalar_select %p317, %s19, 1
      %s319 = smul.addr %s318, 4
      %s320 = scalar_lea.vmem %s8, %s319
      %v321 = vld [vmem:[%s312] sm:$0xff]
      %v322 = vld [vmem:[%s312 + $0x8] sm:$0xff]
      %v323 = vld [vmem:[%s1] sm:$0xff]
      %v324 = vld [vmem:[%s1 + $0x8] sm:$0xff]
      %v325 = vld [vmem:[%s1 + $0x10] sm:$0xff]
      %v326 = vld [vmem:[%s1 + $0x18] sm:$0xff]
      %vm327 = vcmask 261120
      %v329 = vsel %vm327, %v321, 0
      %v332 = vsel %vm327, %v322, 0
      %334 = vmatprep.subr.mxu0 0.0
      %335 = vmatpush1.msra.mxu0 %v323
      %336 = vmatprep.subr.mxu0 0.0
      %337 = vmatpush1.msra.mxu0 %v324
      %338 = vmatprep.subr.mxu0 0.0
      %339 = vmatpush1.msra.mxu0 %v325
      %340 = vmatprep.subr.mxu0 0.0
      %341 = vmatpush1.msra.mxu0 %v326
      %342 = vmatprep.subr.mxu0 0.0
      %343 = vmatpush1.msra.mxu0 0.0
      %344 = vmatprep.subr.mxu0 0.0
      %345 = vmatpush1.msra.mxu0 0.0
      %346 = vmatprep.subr.mxu0 0.0
      %347 = vmatpush1.msra.mxu0 0.0
      %348 = vmatprep.subr.mxu0 0.0
      %349 = vmatpush1.msra.mxu0 0.0
      %350 = vmatprep.subr.mxu0 0.0
      %351 = vmatpush1.msra.mxu0 0.0
      %352 = vmatprep.subr.mxu0 0.0
      %353 = vmatpush1.msra.mxu0 0.0
      %354 = vmatprep.subr.mxu0 0.0
      %355 = vmatpush1.msra.mxu0 0.0
      %356 = vmatprep.subr.mxu0 0.0
      %357 = vmatpush1.msra.mxu0 0.0
      %358 = vmatprep.subr.mxu0 0.0
      %359 = vmatpush1.msra.mxu0 0.0
      %360 = vmatprep.subr.mxu0 0.0
      %361 = vmatpush1.msra.mxu0 0.0
      %362 = vmatprep.subr.mxu0 0.0
      %363 = vmatpush1.msra.mxu0 0.0
      %364 = vmatprep.subr.mxu0 0.0
      %365 = vmatpush1.msra.mxu0 0.0
      %366 = vmatprep.subr.mxu0 0.0
      %367 = vmatpush1.msra.mxu0 0.0
      %368 = vmatprep.subr.mxu0 0.0
      %369 = vmatpush1.msra.mxu0 0.0
      %370 = vmatprep.subr.mxu0 0.0
      %371 = vmatpush1.msra.mxu0 0.0
      %372 = vmatprep.subr.mxu0 0.0
      %373 = vmatpush1.msra.mxu0 0.0
      %374 = vmatprep.subr.mxu0 0.0
      %375 = vmatpush1.msra.mxu0 0.0
      %376 = vmatprep.subr.mxu0 0.0
      %377 = vmatpush1.msra.mxu0 0.0
      %378 = vmatprep.subr.mxu0 0.0
      %379 = vmatpush1.msra.mxu0 0.0
      %380 = vmatprep.subr.mxu0 0.0
      %381 = vmatpush1.msra.mxu0 0.0
      %382 = vmatprep.subr.mxu0 0.0
      %383 = vmatpush1.msra.mxu0 0.0
      %384 = vmatprep.subr.mxu0 0.0
      %385 = vmatpush1.msra.mxu0 0.0
      %386 = vmatprep.subr.mxu0 0.0
      %387 = vmatpush1.msra.mxu0 0.0
      %388 = vmatprep.subr.mxu0 0.0
      %389 = vmatpush1.msra.mxu0 0.0
      %390 = vmatprep.subr.mxu0 0.0
      %391 = vmatpush1.msra.mxu0 0.0
      %392 = vmatprep.subr.mxu0 0.0
      %393 = vmatpush1.msra.mxu0 0.0
      %394 = vmatprep.subr.mxu0 0.0
      %395 = vmatpush1.msra.mxu0 0.0
      %396 = vmatprep.subr.mxu0 0.0
      %397 = vmatpush1.msra.mxu0 0.0
      %398 = vmatprep.mubr.f32.mxu0 0.0
      %399 = vmatmul.mubr.f32.gmra.mrb[0].mxu0 %v329
      %v400 = vpop.f32.mrb[0].mxu0
      %v401 = vadd.f32 0.0, %v400
      %v402 = vpop.f32.mrb[0].mxu0
      %403 = vmatprep.mubr.f32.mxu0 0.0
      %404 = vmatmul.mubr.f32.gmra.mrb[0].mxu0 %v332
      %v405 = vpop.f32.mrb[0].mxu0
      %v406 = vadd.f32 0.0, %v405
      %v407 = vpop.f32.mrb[0].mxu0
      %408 = vdwg.mxu0
      %409 = vxpose.xlu0.b32.start [1/16] %v401, 128
      %410 = vxpose.xlu0.b32.cont [2/16] %v406, 128
      %411 = vxpose.xlu0.b32.cont [3/16] 0.0, 128
      %412 = vxpose.xlu0.b32.cont [4/16] 0.0, 128
      %413 = vxpose.xlu0.b32.cont [5/16] 0.0, 128
      %414 = vxpose.xlu0.b32.cont [6/16] 0.0, 128
      %415 = vxpose.xlu0.b32.cont [7/16] 0.0, 128
      %416 = vxpose.xlu0.b32.cont [8/16] 0.0, 128
      %417 = vxpose.xlu0.b32.cont [9/16] 0.0, 128
      %418 = vxpose.xlu0.b32.cont [10/16] 0.0, 128
      %419 = vxpose.xlu0.b32.cont [11/16] 0.0, 128
      %420 = vxpose.xlu0.b32.cont [12/16] 0.0, 128
      %421 = vxpose.xlu0.b32.cont [13/16] 0.0, 128
      %422 = vxpose.xlu0.b32.cont [14/16] 0.0, 128
      %423 = vxpose.xlu0.b32.cont [15/16] 0.0, 128
      %424 = vxpose.xlu0.b32.end [16/16] 0.0, 128
      %v425 = vpop.trf.xlu0
      %v426 = vpop.trf.xlu0
      %v427 = vpop.trf.xlu0
      %v428 = vpop.trf.xlu0
      %v429 = vpop.trf.xlu0
      %v430 = vpop.trf.xlu0
      %v431 = vpop.trf.xlu0
      %v432 = vpop.trf.xlu0
      %v433 = vpop.trf.xlu0
      %v434 = vpop.trf.xlu0
      %v435 = vpop.trf.xlu0
      %v436 = vpop.trf.xlu0
      %v437 = vpop.trf.xlu0
      %v438 = vpop.trf.xlu0
      %v439 = vpop.trf.xlu0
      %v440 = vpop.trf.xlu0
      %443 = vrot.lane.b32.xlu0 %v401, 124
      %v444 = vpop.permute.xlu0 %443
      %445 = vrot.lane.b32.xlu0 %v406, 124
      %v446 = vpop.permute.xlu0 %445
      %449 = vxpose.xlu0.b32.start [1/16] %v444, 128
      %450 = vxpose.xlu0.b32.cont [2/16] %v446, 128
      %451 = vxpose.xlu0.b32.cont [3/16] 0.0, 128
      %452 = vxpose.xlu0.b32.cont [4/16] 0.0, 128
      %453 = vxpose.xlu0.b32.cont [5/16] 0.0, 128
      %454 = vxpose.xlu0.b32.cont [6/16] 0.0, 128
      %455 = vxpose.xlu0.b32.cont [7/16] 0.0, 128
      %456 = vxpose.xlu0.b32.cont [8/16] 0.0, 128
      %457 = vxpose.xlu0.b32.cont [9/16] 0.0, 128
      %458 = vxpose.xlu0.b32.cont [10/16] 0.0, 128
      %459 = vxpose.xlu0.b32.cont [11/16] 0.0, 128
      %460 = vxpose.xlu0.b32.cont [12/16] 0.0, 128
      %461 = vxpose.xlu0.b32.cont [13/16] 0.0, 128
      %462 = vxpose.xlu0.b32.cont [14/16] 0.0, 128
      %463 = vxpose.xlu0.b32.cont [15/16] 0.0, 128
      %464 = vxpose.xlu0.b32.end [16/16] 0.0, 128
      %v465 = vpop.trf.xlu0
      %v466 = vpop.trf.xlu0
      %v467 = vpop.trf.xlu0
      %v468 = vpop.trf.xlu0
      %v469 = vpop.trf.xlu0
      %v470 = vpop.trf.xlu0
      %v471 = vpop.trf.xlu0
      %v472 = vpop.trf.xlu0
      %v473 = vpop.trf.xlu0
      %v474 = vpop.trf.xlu0
      %v475 = vpop.trf.xlu0
      %v476 = vpop.trf.xlu0
      %v477 = vpop.trf.xlu0
      %v478 = vpop.trf.xlu0
      %v479 = vpop.trf.xlu0
      %v480 = vpop.trf.xlu0
      %v481 = vlaneseq
      %v482 = vshrl.u32 %v481, 7
      %v483 = vsub.s32 0, %v482
      %v484 = vrot.slane %v425, %v483
      %486 = vbcast.lane.b32.xlu0 %v484, 256
      %v487 = vpop.permute.xlu0 %486
      %s489 = sor.u32 256, 8
      %490 = vbcast.lane.b32.xlu0 %v484, %s489
      %v491 = vpop.permute.xlu0 %490
      %v492 = vlaneseq
      %v493 = vshrl.u32 %v492, 7
      %v494 = vsub.s32 1, %v493
      %v495 = vrot.slane %v425, %v494
      %497 = vbcast.lane.b32.xlu0 %v495, 256
      %v498 = vpop.permute.xlu0 %497
      %s500 = sor.u32 256, 8
      %501 = vbcast.lane.b32.xlu0 %v495, %s500
      %v502 = vpop.permute.xlu0 %501
      %v503 = vlaneseq
      %v504 = vshrl.u32 %v503, 7
      %v505 = vsub.s32 2, %v504
      %v506 = vrot.slane %v425, %v505
      %508 = vbcast.lane.b32.xlu0 %v506, 256
      %v509 = vpop.permute.xlu0 %508
      %s511 = sor.u32 256, 8
      %512 = vbcast.lane.b32.xlu0 %v506, %s511
      %v513 = vpop.permute.xlu0 %512
      %v514 = vlaneseq
      %v515 = vshrl.u32 %v514, 7
      %v516 = vsub.s32 3, %v515
      %v517 = vrot.slane %v425, %v516
      %519 = vbcast.lane.b32.xlu0 %v517, 256
      %v520 = vpop.permute.xlu0 %519
      %s522 = sor.u32 256, 8
      %523 = vbcast.lane.b32.xlu0 %v517, %s522
      %v524 = vpop.permute.xlu0 %523
      %v527 = vunpack.c.l.s4 1966171168
      %v528 = vunpack.c.0.s8 %v527
      %v529 = vlaneseq
      %v530 = vshrl.u32 %v529, 7
      %v531 = vsub.s32 %v528, %v530
      %v532 = vrot.slane %v465, %v531
      %v533 = vcombine.high %v532, %v532
      %v535 = vunpack.c.l.s4 1966171168
      %v536 = vunpack.c.0.s8 %v535
      %v537 = vlaneseq
      %v538 = vshrl.u32 %v537, 7
      %v539 = vsub.s32 %v536, %v538
      %v540 = vrot.slane %v532, %v539
      %v542 = vunpack.c.l.s4 1966171168
      %v543 = vunpack.c.0.s8 %v542
      %v544 = vlaneseq
      %v545 = vshrl.u32 %v544, 7
      %v546 = vsub.s32 %v543, %v545
      %v547 = vrot.slane %v533, %v546
      %v548 = vcombine.high %v540, %v540
      %v549 = vcombine.high %v547, %v547
      %v550 = vlaneseq
      %v551 = vshrl.u32 %v550, 7
      %v552 = vsub.s32 0, %v551
      %v553 = vrot.slane %v540, %v552
      %v554 = vlaneseq
      %v555 = vshrl.u32 %v554, 7
      %v556 = vsub.s32 0, %v555
      %v557 = vrot.slane %v547, %v556
      %v558 = vlaneseq
      %v559 = vshrl.u32 %v558, 7
      %v560 = vsub.s32 0, %v559
      %v561 = vrot.slane %v548, %v560
      %v562 = vlaneseq
      %v563 = vshrl.u32 %v562, 7
      %v564 = vsub.s32 0, %v563
      %v565 = vrot.slane %v549, %v564
      %v570 = vadd.f32 %v487, %v553
      %v571 = vadd.f32 %v491, %v553
      %v572 = vadd.f32 %v498, %v557
      %v573 = vadd.f32 %v502, %v557
      %v574 = vadd.f32 %v509, %v561
      %v575 = vadd.f32 %v513, %v561
      %v576 = vadd.f32 %v520, %v565
      %v577 = vadd.f32 %v524, %v565
      %vm578 = vcmp.gt.f32.partialorder %v570, 0.0
      %vm579 = vcmp.gt.f32.partialorder %v571, 0.0
      %vm580 = vcmp.gt.f32.partialorder %v572, 0.0
      %vm581 = vcmp.gt.f32.partialorder %v573, 0.0
      %vm582 = vcmp.gt.f32.partialorder %v574, 0.0
      %vm583 = vcmp.gt.f32.partialorder %v575, 0.0
      %vm584 = vcmp.gt.f32.partialorder %v576, 0.0
      %vm585 = vcmp.gt.f32.partialorder %v577, 0.0
      %v586 = vmul.f32 %v570, 0.2
      %v587 = vmul.f32 %v571, 0.2
      %v588 = vmul.f32 %v572, 0.2
      %v589 = vmul.f32 %v573, 0.2
      %v590 = vmul.f32 %v574, 0.2
      %v591 = vmul.f32 %v575, 0.2
      %v592 = vmul.f32 %v576, 0.2
      %v593 = vmul.f32 %v577, 0.2
      %v594 = vsel %vm578, %v570, %v586
      %v595 = vsel %vm579, %v571, %v587
      %v596 = vsel %vm580, %v572, %v588
      %v597 = vsel %vm581, %v573, %v589
      %v598 = vsel %vm582, %v574, %v590
      %v599 = vsel %vm583, %v575, %v591
      %v600 = vsel %vm584, %v576, %v592
      %v601 = vsel %vm585, %v577, %v593
      %vm602 = vcmask 130048
      %v603 = vsel %vm602, %v594, -inf
      %604 = vmax.xlane.f32.xlu0 %v603
      %v605 = vpop.xlane.xlu0 %604
      %v606 = vsel %vm602, %v595, -inf
      %607 = vmax.xlane.f32.xlu0 %v606
      %v608 = vpop.xlane.xlu0 %607
      %v609 = vsel %vm602, %v596, -inf
      %610 = vmax.xlane.f32.xlu0 %v609
      %v611 = vpop.xlane.xlu0 %610
      %v612 = vsel %vm602, %v597, -inf
      %613 = vmax.xlane.f32.xlu0 %v612
      %v614 = vpop.xlane.xlu0 %613
      %v615 = vsel %vm602, %v598, -inf
      %616 = vmax.xlane.f32.xlu0 %v615
      %v617 = vpop.xlane.xlu0 %616
      %v618 = vsel %vm602, %v599, -inf
      %619 = vmax.xlane.f32.xlu0 %v618
      %v620 = vpop.xlane.xlu0 %619
      %v621 = vsel %vm602, %v600, -inf
      %622 = vmax.xlane.f32.xlu0 %v621
      %v623 = vpop.xlane.xlu0 %622
      %v624 = vsel %vm602, %v601, -inf
      %625 = vmax.xlane.f32.xlu0 %v624
      %v626 = vpop.xlane.xlu0 %625
      %v627 = vsub.f32 %v594, %v605
      %v628 = vsub.f32 %v595, %v608
      %v629 = vsub.f32 %v596, %v611
      %v630 = vsub.f32 %v597, %v614
      %v631 = vsub.f32 %v598, %v617
      %v632 = vsub.f32 %v599, %v620
      %v633 = vsub.f32 %v600, %v623
      %v634 = vsub.f32 %v601, %v626
      %v635 = vmul.f32 %v627, 1.442695
      %v636 = vpow.pop %v635
      %v637 = vmul.f32 %v628, 1.442695
      %v638 = vpow.pop %v637
      %v639 = vmul.f32 %v629, 1.442695
      %v640 = vpow.pop %v639
      %v641 = vmul.f32 %v630, 1.442695
      %v642 = vpow.pop %v641
      %v643 = vmul.f32 %v631, 1.442695
      %v644 = vpow.pop %v643
      %v645 = vmul.f32 %v632, 1.442695
      %v646 = vpow.pop %v645
      %v647 = vmul.f32 %v633, 1.442695
      %v648 = vpow.pop %v647
      %v649 = vmul.f32 %v634, 1.442695
      %v650 = vpow.pop %v649
      %v651 = vsel %vm602, %v636, 0.0
      %652 = vadd.xlane.f32.xlu0 %v651
      %v653 = vpop.xlane.xlu0 %652
      %v654 = vsel %vm602, %v638, 0.0
      %655 = vadd.xlane.f32.xlu0 %v654
      %v656 = vpop.xlane.xlu0 %655
      %v657 = vsel %vm602, %v640, 0.0
      %658 = vadd.xlane.f32.xlu0 %v657
      %v659 = vpop.xlane.xlu0 %658
      %v660 = vsel %vm602, %v642, 0.0
      %661 = vadd.xlane.f32.xlu0 %v660
      %v662 = vpop.xlane.xlu0 %661
      %v663 = vsel %vm602, %v644, 0.0
      %664 = vadd.xlane.f32.xlu0 %v663
      %v665 = vpop.xlane.xlu0 %664
      %v666 = vsel %vm602, %v646, 0.0
      %667 = vadd.xlane.f32.xlu0 %v666
      %v668 = vpop.xlane.xlu0 %667
      %v669 = vsel %vm602, %v648, 0.0
      %670 = vadd.xlane.f32.xlu0 %v669
      %v671 = vpop.xlane.xlu0 %670
      %v672 = vsel %vm602, %v650, 0.0
      %673 = vadd.xlane.f32.xlu0 %v672
      %v674 = vpop.xlane.xlu0 %673
      %v675 = vrcp.pop %v653
      %v676 = vmul.f32 %v636, %v675
      %v677 = vrcp.pop %v656
      %v678 = vmul.f32 %v638, %v677
      %v679 = vrcp.pop %v659
      %v680 = vmul.f32 %v640, %v679
      %v681 = vrcp.pop %v662
      %v682 = vmul.f32 %v642, %v681
      %v683 = vrcp.pop %v665
      %v684 = vmul.f32 %v644, %v683
      %v685 = vrcp.pop %v668
      %v686 = vmul.f32 %v646, %v685
      %v687 = vrcp.pop %v671
      %v688 = vmul.f32 %v648, %v687
      %v689 = vrcp.pop %v674
      %v690 = vmul.f32 %v650, %v689
      %v691 = vsel %vm602, %v676, 0.0
      %v692 = vsel %vm602, %v680, 0.0
      %v693 = vadd.f32 %v691, %v692
      %v694 = vsel %vm602, %v684, 0.0
      %v695 = vadd.f32 %v693, %v694
      %v696 = vsel %vm602, %v688, 0.0
      %v697 = vadd.f32 %v695, %v696
      %v698 = vsel %vm602, %v678, 0.0
      %v699 = vsel %vm602, %v682, 0.0
      %v700 = vadd.f32 %v698, %v699
      %v701 = vsel %vm602, %v686, 0.0
      %v702 = vadd.f32 %v700, %v701
      %v703 = vsel %vm602, %v690, 0.0
      %v704 = vadd.f32 %v702, %v703
      %v705 = vmul.f32 %v697, 0.25
      %v706 = vmul.f32 %v704, 0.25
      %v708 = vsel %vm602, %v705, 0
      %v711 = vsel %vm602, %v706, 0
      %713 = vmatprep.subr.mxu0 0.0
      %714 = vmatpush1.msra.mxu0 %v321
      %715 = vmatprep.subr.mxu0 0.0
      %716 = vmatpush1.msra.mxu0 %v322
      %717 = vmatprep.subr.mxu0 0.0
      %718 = vmatpush1.msra.mxu0 0.0
      %719 = vmatprep.subr.mxu0 0.0
      %720 = vmatpush1.msra.mxu0 0.0
      %721 = vmatprep.subr.mxu0 0.0
      %722 = vmatpush1.msra.mxu0 0.0
      %723 = vmatprep.subr.mxu0 0.0
      %724 = vmatpush1.msra.mxu0 0.0
      %725 = vmatprep.subr.mxu0 0.0
      %726 = vmatpush1.msra.mxu0 0.0
      %727 = vmatprep.subr.mxu0 0.0
      %728 = vmatpush1.msra.mxu0 0.0
      %729 = vmatprep.subr.mxu0 0.0
      %730 = vmatpush1.msra.mxu0 0.0
      %731 = vmatprep.subr.mxu0 0.0
      %732 = vmatpush1.msra.mxu0 0.0
      %733 = vmatprep.subr.mxu0 0.0
      %734 = vmatpush1.msra.mxu0 0.0
      %735 = vmatprep.subr.mxu0 0.0
      %736 = vmatpush1.msra.mxu0 0.0
      %737 = vmatprep.subr.mxu0 0.0
      %738 = vmatpush1.msra.mxu0 0.0
      %739 = vmatprep.subr.mxu0 0.0
      %740 = vmatpush1.msra.mxu0 0.0
      %741 = vmatprep.subr.mxu0 0.0
      %742 = vmatpush1.msra.mxu0 0.0
      %743 = vmatprep.subr.mxu0 0.0
      %744 = vmatpush1.msra.mxu0 0.0
      %745 = vmatprep.subr.mxu0 0.0
      %746 = vmatpush1.msra.mxu0 0.0
      %747 = vmatprep.subr.mxu0 0.0
      %748 = vmatpush1.msra.mxu0 0.0
      %749 = vmatprep.subr.mxu0 0.0
      %750 = vmatpush1.msra.mxu0 0.0
      %751 = vmatprep.subr.mxu0 0.0
      %752 = vmatpush1.msra.mxu0 0.0
      %753 = vmatprep.subr.mxu0 0.0
      %754 = vmatpush1.msra.mxu0 0.0
      %755 = vmatprep.subr.mxu0 0.0
      %756 = vmatpush1.msra.mxu0 0.0
      %757 = vmatprep.subr.mxu0 0.0
      %758 = vmatpush1.msra.mxu0 0.0
      %759 = vmatprep.subr.mxu0 0.0
      %760 = vmatpush1.msra.mxu0 0.0
      %761 = vmatprep.subr.mxu0 0.0
      %762 = vmatpush1.msra.mxu0 0.0
      %763 = vmatprep.subr.mxu0 0.0
      %764 = vmatpush1.msra.mxu0 0.0
      %765 = vmatprep.subr.mxu0 0.0
      %766 = vmatpush1.msra.mxu0 0.0
      %767 = vmatprep.subr.mxu0 0.0
      %768 = vmatpush1.msra.mxu0 0.0
      %769 = vmatprep.subr.mxu0 0.0
      %770 = vmatpush1.msra.mxu0 0.0
      %771 = vmatprep.subr.mxu0 0.0
      %772 = vmatpush1.msra.mxu0 0.0
      %773 = vmatprep.subr.mxu0 0.0
      %774 = vmatpush1.msra.mxu0 0.0
      %775 = vmatprep.subr.mxu0 0.0
      %776 = vmatpush1.msra.mxu0 0.0
      %777 = vmatprep.mubr.f32.mxu0 0.0
      %778 = vmatmul.mubr.f32.gmra.mrb[0].mxu0 %v708
      %v779 = vpop.f32.mrb[0].mxu0
      %v780 = vadd.f32 0.0, %v779
      %v781 = vpop.f32.mrb[0].mxu0
      %782 = vmatprep.mubr.f32.mxu0 0.0
      %783 = vmatmul.mubr.f32.gmra.mrb[0].mxu0 %v711
      %v784 = vpop.f32.mrb[0].mxu0
      %v785 = vadd.f32 0.0, %v784
      %v786 = vpop.f32.mrb[0].mxu0
      %787 = vdwg.mxu0
      %v788 = vld [vmem:[%s2] sm:$0xff]
      %v789 = vld [vmem:[%s2 + $0x8] sm:$0xff]
      %v790 = vld [vmem:[%s2 + $0x10] sm:$0xff]
      %v791 = vld [vmem:[%s2 + $0x18] sm:$0xff]
      %v793 = vsel %vm327, %v780, 0
      %v796 = vsel %vm327, %v785, 0
      %798 = vmatprep.subr.mxu0 0.0
      %799 = vmatpush1.msra.mxu0 %v788
      %800 = vmatprep.subr.mxu0 0.0
      %801 = vmatpush1.msra.mxu0 %v789
      %802 = vmatprep.subr.mxu0 0.0
      %803 = vmatpush1.msra.mxu0 %v790
      %804 = vmatprep.subr.mxu0 0.0
      %805 = vmatpush1.msra.mxu0 %v791
      %806 = vmatprep.subr.mxu0 0.0
      %807 = vmatpush1.msra.mxu0 0.0
      %808 = vmatprep.subr.mxu0 0.0
      %809 = vmatpush1.msra.mxu0 0.0
      %810 = vmatprep.subr.mxu0 0.0
      %811 = vmatpush1.msra.mxu0 0.0
      %812 = vmatprep.subr.mxu0 0.0
      %813 = vmatpush1.msra.mxu0 0.0
      %814 = vmatprep.subr.mxu0 0.0
      %815 = vmatpush1.msra.mxu0 0.0
      %816 = vmatprep.subr.mxu0 0.0
      %817 = vmatpush1.msra.mxu0 0.0
      %818 = vmatprep.subr.mxu0 0.0
      %819 = vmatpush1.msra.mxu0 0.0
      %820 = vmatprep.subr.mxu0 0.0
      %821 = vmatpush1.msra.mxu0 0.0
      %822 = vmatprep.subr.mxu0 0.0
      %823 = vmatpush1.msra.mxu0 0.0
      %824 = vmatprep.subr.mxu0 0.0
      %825 = vmatpush1.msra.mxu0 0.0
      %826 = vmatprep.subr.mxu0 0.0
      %827 = vmatpush1.msra.mxu0 0.0
      %828 = vmatprep.subr.mxu0 0.0
      %829 = vmatpush1.msra.mxu0 0.0
      %830 = vmatprep.subr.mxu0 0.0
      %831 = vmatpush1.msra.mxu0 0.0
      %832 = vmatprep.subr.mxu0 0.0
      %833 = vmatpush1.msra.mxu0 0.0
      %834 = vmatprep.subr.mxu0 0.0
      %835 = vmatpush1.msra.mxu0 0.0
      %836 = vmatprep.subr.mxu0 0.0
      %837 = vmatpush1.msra.mxu0 0.0
      %838 = vmatprep.subr.mxu0 0.0
      %839 = vmatpush1.msra.mxu0 0.0
      %840 = vmatprep.subr.mxu0 0.0
      %841 = vmatpush1.msra.mxu0 0.0
      %842 = vmatprep.subr.mxu0 0.0
      %843 = vmatpush1.msra.mxu0 0.0
      %844 = vmatprep.subr.mxu0 0.0
      %845 = vmatpush1.msra.mxu0 0.0
      %846 = vmatprep.subr.mxu0 0.0
      %847 = vmatpush1.msra.mxu0 0.0
      %848 = vmatprep.subr.mxu0 0.0
      %849 = vmatpush1.msra.mxu0 0.0
      %850 = vmatprep.subr.mxu0 0.0
      %851 = vmatpush1.msra.mxu0 0.0
      %852 = vmatprep.subr.mxu0 0.0
      %853 = vmatpush1.msra.mxu0 0.0
      %854 = vmatprep.subr.mxu0 0.0
      %855 = vmatpush1.msra.mxu0 0.0
      %856 = vmatprep.subr.mxu0 0.0
      %857 = vmatpush1.msra.mxu0 0.0
      %858 = vmatprep.subr.mxu0 0.0
      %859 = vmatpush1.msra.mxu0 0.0
      %860 = vmatprep.subr.mxu0 0.0
      %861 = vmatpush1.msra.mxu0 0.0
      %862 = vmatprep.mubr.f32.mxu0 0.0
      %863 = vmatmul.mubr.f32.gmra.mrb[0].mxu0 %v793
      %v864 = vpop.f32.mrb[0].mxu0
      %v865 = vadd.f32 0.0, %v864
      %v866 = vpop.f32.mrb[0].mxu0
      %867 = vmatprep.mubr.f32.mxu0 0.0
      %868 = vmatmul.mubr.f32.gmra.mrb[0].mxu0 %v796
      %v869 = vpop.f32.mrb[0].mxu0
      %v870 = vadd.f32 0.0, %v869
      %v871 = vpop.f32.mrb[0].mxu0
      %872 = vdwg.mxu0
      %873 = vxpose.xlu0.b32.start [1/16] %v865, 128
      %874 = vxpose.xlu0.b32.cont [2/16] %v870, 128
      %875 = vxpose.xlu0.b32.cont [3/16] 0.0, 128
      %876 = vxpose.xlu0.b32.cont [4/16] 0.0, 128
      %877 = vxpose.xlu0.b32.cont [5/16] 0.0, 128
      %878 = vxpose.xlu0.b32.cont [6/16] 0.0, 128
      %879 = vxpose.xlu0.b32.cont [7/16] 0.0, 128
      %880 = vxpose.xlu0.b32.cont [8/16] 0.0, 128
      %881 = vxpose.xlu0.b32.cont [9/16] 0.0, 128
      %882 = vxpose.xlu0.b32.cont [10/16] 0.0, 128
      %883 = vxpose.xlu0.b32.cont [11/16] 0.0, 128
      %884 = vxpose.xlu0.b32.cont [12/16] 0.0, 128
      %885 = vxpose.xlu0.b32.cont [13/16] 0.0, 128
      %886 = vxpose.xlu0.b32.cont [14/16] 0.0, 128
      %887 = vxpose.xlu0.b32.cont [15/16] 0.0, 128
      %888 = vxpose.xlu0.b32.end [16/16] 0.0, 128
      %v889 = vpop.trf.xlu0
      %v890 = vpop.trf.xlu0
      %v891 = vpop.trf.xlu0
      %v892 = vpop.trf.xlu0
      %v893 = vpop.trf.xlu0
      %v894 = vpop.trf.xlu0
      %v895 = vpop.trf.xlu0
      %v896 = vpop.trf.xlu0
      %v897 = vpop.trf.xlu0
      %v898 = vpop.trf.xlu0
      %v899 = vpop.trf.xlu0
      %v900 = vpop.trf.xlu0
      %v901 = vpop.trf.xlu0
      %v902 = vpop.trf.xlu0
      %v903 = vpop.trf.xlu0
      %v904 = vpop.trf.xlu0
      %v905 = vld [vmem:[%s3] sm:$0xff]
      %v906 = vld [vmem:[%s3 + $0x8] sm:$0xff]
      %v907 = vld [vmem:[%s3 + $0x10] sm:$0xff]
      %v908 = vld [vmem:[%s3 + $0x18] sm:$0xff]
      %v909 = vld [vmem:[%s3 + $0x20] sm:$0xff]
      %v910 = vld [vmem:[%s3 + $0x28] sm:$0xff]
      %v911 = vld [vmem:[%s3 + $0x30] sm:$0xff]
      %v912 = vld [vmem:[%s3 + $0x38] sm:$0xff]
      %v914 = vsel %vm602, %v889, 0
      %916 = vmatprep.subr.mxu0 0.0
      %917 = vmatpush1.msra.mxu0 %v905
      %918 = vmatprep.subr.mxu0 0.0
      %919 = vmatpush1.msra.mxu0 %v906
      %920 = vmatprep.subr.mxu0 0.0
      %921 = vmatpush1.msra.mxu0 0.0
      %922 = vmatprep.subr.mxu0 0.0
      %923 = vmatpush1.msra.mxu0 0.0
      %924 = vmatprep.subr.mxu0 0.0
      %925 = vmatpush1.msra.mxu0 0.0
      %926 = vmatprep.subr.mxu0 0.0
      %927 = vmatpush1.msra.mxu0 0.0
      %928 = vmatprep.subr.mxu0 0.0
      %929 = vmatpush1.msra.mxu0 0.0
      %930 = vmatprep.subr.mxu0 0.0
      %931 = vmatpush1.msra.mxu0 0.0
      %932 = vmatprep.subr.mxu0 0.0
      %933 = vmatpush1.msra.mxu0 0.0
      %934 = vmatprep.subr.mxu0 0.0
      %935 = vmatpush1.msra.mxu0 0.0
      %936 = vmatprep.subr.mxu0 0.0
      %937 = vmatpush1.msra.mxu0 0.0
      %938 = vmatprep.subr.mxu0 0.0
      %939 = vmatpush1.msra.mxu0 0.0
      %940 = vmatprep.subr.mxu0 0.0
      %941 = vmatpush1.msra.mxu0 0.0
      %942 = vmatprep.subr.mxu0 0.0
      %943 = vmatpush1.msra.mxu0 0.0
      %944 = vmatprep.subr.mxu0 0.0
      %945 = vmatpush1.msra.mxu0 0.0
      %946 = vmatprep.subr.mxu0 0.0
      %947 = vmatpush1.msra.mxu0 0.0
      %948 = vmatprep.subr.mxu0 0.0
      %949 = vmatpush1.msra.mxu0 0.0
      %950 = vmatprep.subr.mxu0 0.0
      %951 = vmatpush1.msra.mxu0 0.0
      %952 = vmatprep.subr.mxu0 0.0
      %953 = vmatpush1.msra.mxu0 0.0
      %954 = vmatprep.subr.mxu0 0.0
      %955 = vmatpush1.msra.mxu0 0.0
      %956 = vmatprep.subr.mxu0 0.0
      %957 = vmatpush1.msra.mxu0 0.0
      %958 = vmatprep.subr.mxu0 0.0
      %959 = vmatpush1.msra.mxu0 0.0
      %960 = vmatprep.subr.mxu0 0.0
      %961 = vmatpush1.msra.mxu0 0.0
      %962 = vmatprep.subr.mxu0 0.0
      %963 = vmatpush1.msra.mxu0 0.0
      %964 = vmatprep.subr.mxu0 0.0
      %965 = vmatpush1.msra.mxu0 0.0
      %966 = vmatprep.subr.mxu0 0.0
      %967 = vmatpush1.msra.mxu0 0.0
      %968 = vmatprep.subr.mxu0 0.0
      %969 = vmatpush1.msra.mxu0 0.0
      %970 = vmatprep.subr.mxu0 0.0
      %971 = vmatpush1.msra.mxu0 0.0
      %972 = vmatprep.subr.mxu0 0.0
      %973 = vmatpush1.msra.mxu0 0.0
      %974 = vmatprep.subr.mxu0 0.0
      %975 = vmatpush1.msra.mxu0 0.0
      %976 = vmatprep.subr.mxu0 0.0
      %977 = vmatpush1.msra.mxu0 0.0
      %978 = vmatprep.subr.mxu0 0.0
      %979 = vmatpush1.msra.mxu0 0.0
      %980 = vmatprep.mubr.f32.mxu0 0.0
      %981 = vmatmul.mubr.f32.gmra.mrb[0].mxu0 %v914
      %v982 = vpop.f32.mrb[0].mxu0
      %v983 = vadd.f32 0.0, %v982
      %v984 = vpop.f32.mrb[0].mxu0
      %985 = vdwg.mxu0
      %v987 = vsel %vm602, %v890, 0
      %989 = vmatprep.subr.mxu0 0.0
      %990 = vmatpush1.msra.mxu0 %v907
      %991 = vmatprep.subr.mxu0 0.0
      %992 = vmatpush1.msra.mxu0 %v908
      %993 = vmatprep.subr.mxu0 0.0
      %994 = vmatpush1.msra.mxu0 0.0
      %995 = vmatprep.subr.mxu0 0.0
      %996 = vmatpush1.msra.mxu0 0.0
      %997 = vmatprep.subr.mxu0 0.0
      %998 = vmatpush1.msra.mxu0 0.0
      %999 = vmatprep.subr.mxu0 0.0
      %1000 = vmatpush1.msra.mxu0 0.0
      %1001 = vmatprep.subr.mxu0 0.0
      %1002 = vmatpush1.msra.mxu0 0.0
      %1003 = vmatprep.subr.mxu0 0.0
      %1004 = vmatpush1.msra.mxu0 0.0
      %1005 = vmatprep.subr.mxu0 0.0
      %1006 = vmatpush1.msra.mxu0 0.0
      %1007 = vmatprep.subr.mxu0 0.0
      %1008 = vmatpush1.msra.mxu0 0.0
      %1009 = vmatprep.subr.mxu0 0.0
      %1010 = vmatpush1.msra.mxu0 0.0
      %1011 = vmatprep.subr.mxu0 0.0
      %1012 = vmatpush1.msra.mxu0 0.0
      %1013 = vmatprep.subr.mxu0 0.0
      %1014 = vmatpush1.msra.mxu0 0.0
      %1015 = vmatprep.subr.mxu0 0.0
      %1016 = vmatpush1.msra.mxu0 0.0
      %1017 = vmatprep.subr.mxu0 0.0
      %1018 = vmatpush1.msra.mxu0 0.0
      %1019 = vmatprep.subr.mxu0 0.0
      %1020 = vmatpush1.msra.mxu0 0.0
      %1021 = vmatprep.subr.mxu0 0.0
      %1022 = vmatpush1.msra.mxu0 0.0
      %1023 = vmatprep.subr.mxu0 0.0
      %1024 = vmatpush1.msra.mxu0 0.0
      %1025 = vmatprep.subr.mxu0 0.0
      %1026 = vmatpush1.msra.mxu0 0.0
      %1027 = vmatprep.subr.mxu0 0.0
      %1028 = vmatpush1.msra.mxu0 0.0
      %1029 = vmatprep.subr.mxu0 0.0
      %1030 = vmatpush1.msra.mxu0 0.0
      %1031 = vmatprep.subr.mxu0 0.0
      %1032 = vmatpush1.msra.mxu0 0.0
      %1033 = vmatprep.subr.mxu0 0.0
      %1034 = vmatpush1.msra.mxu0 0.0
      %1035 = vmatprep.subr.mxu0 0.0
      %1036 = vmatpush1.msra.mxu0 0.0
      %1037 = vmatprep.subr.mxu0 0.0
      %1038 = vmatpush1.msra.mxu0 0.0
      %1039 = vmatprep.subr.mxu0 0.0
      %1040 = vmatpush1.msra.mxu0 0.0
      %1041 = vmatprep.subr.mxu0 0.0
      %1042 = vmatpush1.msra.mxu0 0.0
      %1043 = vmatprep.subr.mxu0 0.0
      %1044 = vmatpush1.msra.mxu0 0.0
      %1045 = vmatprep.subr.mxu0 0.0
      %1046 = vmatpush1.msra.mxu0 0.0
      %1047 = vmatprep.subr.mxu0 0.0
      %1048 = vmatpush1.msra.mxu0 0.0
      %1049 = vmatprep.subr.mxu0 0.0
      %1050 = vmatpush1.msra.mxu0 0.0
      %1051 = vmatprep.subr.mxu0 0.0
      %1052 = vmatpush1.msra.mxu0 0.0
      %1053 = vmatprep.mubr.f32.mxu0 0.0
      %1054 = vmatmul.mubr.f32.gmra.mrb[0].mxu0 %v987
      %v1055 = vpop.f32.mrb[0].mxu0
      %v1056 = vadd.f32 0.0, %v1055
      %v1057 = vpop.f32.mrb[0].mxu0
      %1058 = vdwg.mxu0
      %v1060 = vsel %vm602, %v891, 0
      %1062 = vmatprep.subr.mxu0 0.0
      %1063 = vmatpush1.msra.mxu0 %v909
      %1064 = vmatprep.subr.mxu0 0.0
      %1065 = vmatpush1.msra.mxu0 %v910
      %1066 = vmatprep.subr.mxu0 0.0
      %1067 = vmatpush1.msra.mxu0 0.0
      %1068 = vmatprep.subr.mxu0 0.0
      %1069 = vmatpush1.msra.mxu0 0.0
      %1070 = vmatprep.subr.mxu0 0.0
      %1071 = vmatpush1.msra.mxu0 0.0
      %1072 = vmatprep.subr.mxu0 0.0
      %1073 = vmatpush1.msra.mxu0 0.0
      %1074 = vmatprep.subr.mxu0 0.0
      %1075 = vmatpush1.msra.mxu0 0.0
      %1076 = vmatprep.subr.mxu0 0.0
      %1077 = vmatpush1.msra.mxu0 0.0
      %1078 = vmatprep.subr.mxu0 0.0
      %1079 = vmatpush1.msra.mxu0 0.0
      %1080 = vmatprep.subr.mxu0 0.0
      %1081 = vmatpush1.msra.mxu0 0.0
      %1082 = vmatprep.subr.mxu0 0.0
      %1083 = vmatpush1.msra.mxu0 0.0
      %1084 = vmatprep.subr.mxu0 0.0
      %1085 = vmatpush1.msra.mxu0 0.0
      %1086 = vmatprep.subr.mxu0 0.0
      %1087 = vmatpush1.msra.mxu0 0.0
      %1088 = vmatprep.subr.mxu0 0.0
      %1089 = vmatpush1.msra.mxu0 0.0
      %1090 = vmatprep.subr.mxu0 0.0
      %1091 = vmatpush1.msra.mxu0 0.0
      %1092 = vmatprep.subr.mxu0 0.0
      %1093 = vmatpush1.msra.mxu0 0.0
      %1094 = vmatprep.subr.mxu0 0.0
      %1095 = vmatpush1.msra.mxu0 0.0
      %1096 = vmatprep.subr.mxu0 0.0
      %1097 = vmatpush1.msra.mxu0 0.0
      %1098 = vmatprep.subr.mxu0 0.0
      %1099 = vmatpush1.msra.mxu0 0.0
      %1100 = vmatprep.subr.mxu0 0.0
      %1101 = vmatpush1.msra.mxu0 0.0
      %1102 = vmatprep.subr.mxu0 0.0
      %1103 = vmatpush1.msra.mxu0 0.0
      %1104 = vmatprep.subr.mxu0 0.0
      %1105 = vmatpush1.msra.mxu0 0.0
      %1106 = vmatprep.subr.mxu0 0.0
      %1107 = vmatpush1.msra.mxu0 0.0
      %1108 = vmatprep.subr.mxu0 0.0
      %1109 = vmatpush1.msra.mxu0 0.0
      %1110 = vmatprep.subr.mxu0 0.0
      %1111 = vmatpush1.msra.mxu0 0.0
      %1112 = vmatprep.subr.mxu0 0.0
      %1113 = vmatpush1.msra.mxu0 0.0
      %1114 = vmatprep.subr.mxu0 0.0
      %1115 = vmatpush1.msra.mxu0 0.0
      %1116 = vmatprep.subr.mxu0 0.0
      %1117 = vmatpush1.msra.mxu0 0.0
      %1118 = vmatprep.subr.mxu0 0.0
      %1119 = vmatpush1.msra.mxu0 0.0
      %1120 = vmatprep.subr.mxu0 0.0
      %1121 = vmatpush1.msra.mxu0 0.0
      %1122 = vmatprep.subr.mxu0 0.0
      %1123 = vmatpush1.msra.mxu0 0.0
      %1124 = vmatprep.subr.mxu0 0.0
      %1125 = vmatpush1.msra.mxu0 0.0
      %1126 = vmatprep.mubr.f32.mxu0 0.0
      %1127 = vmatmul.mubr.f32.gmra.mrb[0].mxu0 %v1060
      %v1128 = vpop.f32.mrb[0].mxu0
      %v1129 = vadd.f32 0.0, %v1128
      %v1130 = vpop.f32.mrb[0].mxu0
      %1131 = vdwg.mxu0
      %v1133 = vsel %vm602, %v892, 0
      %1135 = vmatprep.subr.mxu0 0.0
      %1136 = vmatpush1.msra.mxu0 %v911
      %1137 = vmatprep.subr.mxu0 0.0
      %1138 = vmatpush1.msra.mxu0 %v912
      %1139 = vmatprep.subr.mxu0 0.0
      %1140 = vmatpush1.msra.mxu0 0.0
      %1141 = vmatprep.subr.mxu0 0.0
      %1142 = vmatpush1.msra.mxu0 0.0
      %1143 = vmatprep.subr.mxu0 0.0
      %1144 = vmatpush1.msra.mxu0 0.0
      %1145 = vmatprep.subr.mxu0 0.0
      %1146 = vmatpush1.msra.mxu0 0.0
      %1147 = vmatprep.subr.mxu0 0.0
      %1148 = vmatpush1.msra.mxu0 0.0
      %1149 = vmatprep.subr.mxu0 0.0
      %1150 = vmatpush1.msra.mxu0 0.0
      %1151 = vmatprep.subr.mxu0 0.0
      %1152 = vmatpush1.msra.mxu0 0.0
      %1153 = vmatprep.subr.mxu0 0.0
      %1154 = vmatpush1.msra.mxu0 0.0
      %1155 = vmatprep.subr.mxu0 0.0
      %1156 = vmatpush1.msra.mxu0 0.0
      %1157 = vmatprep.subr.mxu0 0.0
      %1158 = vmatpush1.msra.mxu0 0.0
      %1159 = vmatprep.subr.mxu0 0.0
      %1160 = vmatpush1.msra.mxu0 0.0
      %1161 = vmatprep.subr.mxu0 0.0
      %1162 = vmatpush1.msra.mxu0 0.0
      %1163 = vmatprep.subr.mxu0 0.0
      %1164 = vmatpush1.msra.mxu0 0.0
      %1165 = vmatprep.subr.mxu0 0.0
      %1166 = vmatpush1.msra.mxu0 0.0
      %1167 = vmatprep.subr.mxu0 0.0
      %1168 = vmatpush1.msra.mxu0 0.0
      %1169 = vmatprep.subr.mxu0 0.0
      %1170 = vmatpush1.msra.mxu0 0.0
      %1171 = vmatprep.subr.mxu0 0.0
      %1172 = vmatpush1.msra.mxu0 0.0
      %1173 = vmatprep.subr.mxu0 0.0
      %1174 = vmatpush1.msra.mxu0 0.0
      %1175 = vmatprep.subr.mxu0 0.0
      %1176 = vmatpush1.msra.mxu0 0.0
      %1177 = vmatprep.subr.mxu0 0.0
      %1178 = vmatpush1.msra.mxu0 0.0
      %1179 = vmatprep.subr.mxu0 0.0
      %1180 = vmatpush1.msra.mxu0 0.0
      %1181 = vmatprep.subr.mxu0 0.0
      %1182 = vmatpush1.msra.mxu0 0.0
      %1183 = vmatprep.subr.mxu0 0.0
      %1184 = vmatpush1.msra.mxu0 0.0
      %1185 = vmatprep.subr.mxu0 0.0
      %1186 = vmatpush1.msra.mxu0 0.0
      %1187 = vmatprep.subr.mxu0 0.0
      %1188 = vmatpush1.msra.mxu0 0.0
      %1189 = vmatprep.subr.mxu0 0.0
      %1190 = vmatpush1.msra.mxu0 0.0
      %1191 = vmatprep.subr.mxu0 0.0
      %1192 = vmatpush1.msra.mxu0 0.0
      %1193 = vmatprep.subr.mxu0 0.0
      %1194 = vmatpush1.msra.mxu0 0.0
      %1195 = vmatprep.subr.mxu0 0.0
      %1196 = vmatpush1.msra.mxu0 0.0
      %1197 = vmatprep.subr.mxu0 0.0
      %1198 = vmatpush1.msra.mxu0 0.0
      %1199 = vmatprep.mubr.f32.mxu0 0.0
      %1200 = vmatmul.mubr.f32.gmra.mrb[0].mxu0 %v1133
      %v1201 = vpop.f32.mrb[0].mxu0
      %v1202 = vadd.f32 0.0, %v1201
      %v1203 = vpop.f32.mrb[0].mxu0
      %1204 = vdwg.mxu0
      %vm1205 = vcmask 64512
      %v1206 = vsel %vm1205, %v983, 0.0
      %v1207 = vsel %vm1205, %v1056, 0.0
      %v1208 = vadd.f32 %v1206, %v1207
      %v1209 = vsel %vm1205, %v1129, 0.0
      %v1210 = vadd.f32 %v1208, %v1209
      %v1211 = vsel %vm1205, %v1202, 0.0
      %v1212 = vadd.f32 %v1210, %v1211
      %1213 = vxpose.xlu0.b32.start [1/16] %v1212, 128
      %1214 = vxpose.xlu0.b32.cont [2/16] 0.0, 128
      %1215 = vxpose.xlu0.b32.cont [3/16] 0.0, 128
      %1216 = vxpose.xlu0.b32.cont [4/16] 0.0, 128
      %1217 = vxpose.xlu0.b32.cont [5/16] 0.0, 128
      %1218 = vxpose.xlu0.b32.cont [6/16] 0.0, 128
      %1219 = vxpose.xlu0.b32.cont [7/16] 0.0, 128
      %1220 = vxpose.xlu0.b32.cont [8/16] 0.0, 128
      %1221 = vxpose.xlu0.b32.cont [9/16] 0.0, 128
      %1222 = vxpose.xlu0.b32.cont [10/16] 0.0, 128
      %1223 = vxpose.xlu0.b32.cont [11/16] 0.0, 128
      %1224 = vxpose.xlu0.b32.cont [12/16] 0.0, 128
      %1225 = vxpose.xlu0.b32.cont [13/16] 0.0, 128
      %1226 = vxpose.xlu0.b32.cont [14/16] 0.0, 128
      %1227 = vxpose.xlu0.b32.cont [15/16] 0.0, 128
      %1228 = vxpose.xlu0.b32.end [16/16] 0.0, 128
      %v1229 = vpop.trf.xlu0
      %v1230 = vpop.trf.xlu0
      %v1231 = vpop.trf.xlu0
      %v1232 = vpop.trf.xlu0
      %v1233 = vpop.trf.xlu0
      %v1234 = vpop.trf.xlu0
      %v1235 = vpop.trf.xlu0
      %v1236 = vpop.trf.xlu0
      %v1237 = vpop.trf.xlu0
      %v1238 = vpop.trf.xlu0
      %v1239 = vpop.trf.xlu0
      %v1240 = vpop.trf.xlu0
      %v1241 = vpop.trf.xlu0
      %v1242 = vpop.trf.xlu0
      %v1243 = vpop.trf.xlu0
      %v1244 = vpop.trf.xlu0
      %1246 = vrot.lane.b32.xlu0 %v1212, 124
      %v1247 = vpop.permute.xlu0 %1246
      %1249 = vxpose.xlu0.b32.start [1/16] %v1247, 128
      %1250 = vxpose.xlu0.b32.cont [2/16] 0.0, 128
      %1251 = vxpose.xlu0.b32.cont [3/16] 0.0, 128
      %1252 = vxpose.xlu0.b32.cont [4/16] 0.0, 128
      %1253 = vxpose.xlu0.b32.cont [5/16] 0.0, 128
      %1254 = vxpose.xlu0.b32.cont [6/16] 0.0, 128
      %1255 = vxpose.xlu0.b32.cont [7/16] 0.0, 128
      %1256 = vxpose.xlu0.b32.cont [8/16] 0.0, 128
      %1257 = vxpose.xlu0.b32.cont [9/16] 0.0, 128
      %1258 = vxpose.xlu0.b32.cont [10/16] 0.0, 128
      %1259 = vxpose.xlu0.b32.cont [11/16] 0.0, 128
      %1260 = vxpose.xlu0.b32.cont [12/16] 0.0, 128
      %1261 = vxpose.xlu0.b32.cont [13/16] 0.0, 128
      %1262 = vxpose.xlu0.b32.cont [14/16] 0.0, 128
      %1263 = vxpose.xlu0.b32.cont [15/16] 0.0, 128
      %1264 = vxpose.xlu0.b32.end [16/16] 0.0, 128
      %v1265 = vpop.trf.xlu0
      %v1266 = vpop.trf.xlu0
      %v1267 = vpop.trf.xlu0
      %v1268 = vpop.trf.xlu0
      %v1269 = vpop.trf.xlu0
      %v1270 = vpop.trf.xlu0
      %v1271 = vpop.trf.xlu0
      %v1272 = vpop.trf.xlu0
      %v1273 = vpop.trf.xlu0
      %v1274 = vpop.trf.xlu0
      %v1275 = vpop.trf.xlu0
      %v1276 = vpop.trf.xlu0
      %v1277 = vpop.trf.xlu0
      %v1278 = vpop.trf.xlu0
      %v1279 = vpop.trf.xlu0
      %v1280 = vpop.trf.xlu0
      %v1281 = vlaneseq
      %v1282 = vshrl.u32 %v1281, 7
      %v1283 = vsub.s32 0, %v1282
      %v1284 = vrot.slane %v1229, %v1283
      %1286 = vbcast.lane.b32.xlu0 %v1284, 256
      %v1287 = vpop.permute.xlu0 %1286
      %v1288 = vlaneseq
      %v1289 = vshrl.u32 %v1288, 7
      %v1290 = vsub.s32 1, %v1289
      %v1291 = vrot.slane %v1229, %v1290
      %1293 = vbcast.lane.b32.xlu0 %v1291, 256
      %v1294 = vpop.permute.xlu0 %1293
      %v1295 = vlaneseq
      %v1296 = vshrl.u32 %v1295, 7
      %v1297 = vsub.s32 2, %v1296
      %v1298 = vrot.slane %v1229, %v1297
      %1300 = vbcast.lane.b32.xlu0 %v1298, 256
      %v1301 = vpop.permute.xlu0 %1300
      %v1302 = vlaneseq
      %v1303 = vshrl.u32 %v1302, 7
      %v1304 = vsub.s32 3, %v1303
      %v1305 = vrot.slane %v1229, %v1304
      %1307 = vbcast.lane.b32.xlu0 %v1305, 256
      %v1308 = vpop.permute.xlu0 %1307
      %v1311 = vunpack.c.l.s4 1966171168
      %v1312 = vunpack.c.0.s8 %v1311
      %v1313 = vlaneseq
      %v1314 = vshrl.u32 %v1313, 7
      %v1315 = vsub.s32 %v1312, %v1314
      %v1316 = vrot.slane %v1265, %v1315
      %v1317 = vcombine.high %v1316, %v1316
      %v1319 = vunpack.c.l.s4 1966171168
      %v1320 = vunpack.c.0.s8 %v1319
      %v1321 = vlaneseq
      %v1322 = vshrl.u32 %v1321, 7
      %v1323 = vsub.s32 %v1320, %v1322
      %v1324 = vrot.slane %v1316, %v1323
      %v1326 = vunpack.c.l.s4 1966171168
      %v1327 = vunpack.c.0.s8 %v1326
      %v1328 = vlaneseq
      %v1329 = vshrl.u32 %v1328, 7
      %v1330 = vsub.s32 %v1327, %v1329
      %v1331 = vrot.slane %v1317, %v1330
      %v1332 = vcombine.high %v1324, %v1324
      %v1333 = vcombine.high %v1331, %v1331
      %v1334 = vlaneseq
      %v1335 = vshrl.u32 %v1334, 7
      %v1336 = vsub.s32 0, %v1335
      %v1337 = vrot.slane %v1324, %v1336
      %v1338 = vlaneseq
      %v1339 = vshrl.u32 %v1338, 7
      %v1340 = vsub.s32 0, %v1339
      %v1341 = vrot.slane %v1331, %v1340
      %v1342 = vlaneseq
      %v1343 = vshrl.u32 %v1342, 7
      %v1344 = vsub.s32 0, %v1343
      %v1345 = vrot.slane %v1332, %v1344
      %v1346 = vlaneseq
      %v1347 = vshrl.u32 %v1346, 7
      %v1348 = vsub.s32 0, %v1347
      %v1349 = vrot.slane %v1333, %v1348
      %v1354 = vadd.f32 %v1287, %v1337
      %v1355 = vadd.f32 %v1294, %v1341
      %v1356 = vadd.f32 %v1301, %v1345
      %v1357 = vadd.f32 %v1308, %v1349
      %vm1358 = vcmp.gt.f32.partialorder %v1354, 0.0
      %vm1359 = vcmp.gt.f32.partialorder %v1355, 0.0
      %vm1360 = vcmp.gt.f32.partialorder %v1356, 0.0
      %vm1361 = vcmp.gt.f32.partialorder %v1357, 0.0
      %v1362 = vmul.f32 %v1354, 0.2
      %v1363 = vmul.f32 %v1355, 0.2
      %v1364 = vmul.f32 %v1356, 0.2
      %v1365 = vmul.f32 %v1357, 0.2
      %v1366 = vsel %vm1358, %v1354, %v1362
      %v1367 = vsel %vm1359, %v1355, %v1363
      %v1368 = vsel %vm1360, %v1356, %v1364
      %v1369 = vsel %vm1361, %v1357, %v1365
      %v1370 = vsel %vm1205, %v1366, -inf
      %1371 = vmax.xlane.f32.xlu0 %v1370
      %v1372 = vpop.xlane.xlu0 %1371
      %v1373 = vsel %vm1205, %v1367, -inf
      %1374 = vmax.xlane.f32.xlu0 %v1373
      %v1375 = vpop.xlane.xlu0 %1374
      %v1376 = vsel %vm1205, %v1368, -inf
      %1377 = vmax.xlane.f32.xlu0 %v1376
      %v1378 = vpop.xlane.xlu0 %1377
      %v1379 = vsel %vm1205, %v1369, -inf
      %1380 = vmax.xlane.f32.xlu0 %v1379
      %v1381 = vpop.xlane.xlu0 %1380
      %v1382 = vsub.f32 %v1366, %v1372
      %v1383 = vsub.f32 %v1367, %v1375
      %v1384 = vsub.f32 %v1368, %v1378
      %v1385 = vsub.f32 %v1369, %v1381
      %v1386 = vmul.f32 %v1382, 1.442695
      %v1387 = vpow.pop %v1386
      %v1388 = vmul.f32 %v1383, 1.442695
      %v1389 = vpow.pop %v1388
      %v1390 = vmul.f32 %v1384, 1.442695
      %v1391 = vpow.pop %v1390
      %v1392 = vmul.f32 %v1385, 1.442695
      %v1393 = vpow.pop %v1392
      %v1394 = vsel %vm1205, %v1387, 0.0
      %1395 = vadd.xlane.f32.xlu0 %v1394
      %v1396 = vpop.xlane.xlu0 %1395
      %v1397 = vsel %vm1205, %v1389, 0.0
      %1398 = vadd.xlane.f32.xlu0 %v1397
      %v1399 = vpop.xlane.xlu0 %1398
      %v1400 = vsel %vm1205, %v1391, 0.0
      %1401 = vadd.xlane.f32.xlu0 %v1400
      %v1402 = vpop.xlane.xlu0 %1401
      %v1403 = vsel %vm1205, %v1393, 0.0
      %1404 = vadd.xlane.f32.xlu0 %v1403
      %v1405 = vpop.xlane.xlu0 %1404
      %v1406 = vrcp.pop %v1396
      %v1407 = vmul.f32 %v1387, %v1406
      %v1408 = vrcp.pop %v1399
      %v1409 = vmul.f32 %v1389, %v1408
      %v1410 = vrcp.pop %v1402
      %v1411 = vmul.f32 %v1391, %v1410
      %v1412 = vrcp.pop %v1405
      %v1413 = vmul.f32 %v1393, %v1412
      %v1414 = vsel %vm1205, %v1407, 0.0
      %v1415 = vsel %vm1205, %v1409, 0.0
      %v1416 = vadd.f32 %v1414, %v1415
      %v1417 = vsel %vm1205, %v1411, 0.0
      %v1418 = vadd.f32 %v1416, %v1417
      %v1419 = vsel %vm1205, %v1413, 0.0
      %v1420 = vadd.f32 %v1418, %v1419
      %v1421 = vmul.f32 %v1420, 0.25
      %v1423 = vsel %vm1205, %v1421, 0
      %1425 = vmatprep.subr.mxu0 0.0
      %1426 = vmatpush1.msra.mxu0 %v889
      %1427 = vmatprep.subr.mxu0 0.0
      %1428 = vmatpush1.msra.mxu0 0.0
      %1429 = vmatprep.subr.mxu0 0.0
      %1430 = vmatpush1.msra.mxu0 0.0
      %1431 = vmatprep.subr.mxu0 0.0
      %1432 = vmatpush1.msra.mxu0 0.0
      %1433 = vmatprep.subr.mxu0 0.0
      %1434 = vmatpush1.msra.mxu0 0.0
      %1435 = vmatprep.subr.mxu0 0.0
      %1436 = vmatpush1.msra.mxu0 0.0
      %1437 = vmatprep.subr.mxu0 0.0
      %1438 = vmatpush1.msra.mxu0 0.0
      %1439 = vmatprep.subr.mxu0 0.0
      %1440 = vmatpush1.msra.mxu0 0.0
      %1441 = vmatprep.subr.mxu0 0.0
      %1442 = vmatpush1.msra.mxu0 0.0
      %1443 = vmatprep.subr.mxu0 0.0
      %1444 = vmatpush1.msra.mxu0 0.0
      %1445 = vmatprep.subr.mxu0 0.0
      %1446 = vmatpush1.msra.mxu0 0.0
      %1447 = vmatprep.subr.mxu0 0.0
      %1448 = vmatpush1.msra.mxu0 0.0
      %1449 = vmatprep.subr.mxu0 0.0
      %1450 = vmatpush1.msra.mxu0 0.0
      %1451 = vmatprep.subr.mxu0 0.0
      %1452 = vmatpush1.msra.mxu0 0.0
      %1453 = vmatprep.subr.mxu0 0.0
      %1454 = vmatpush1.msra.mxu0 0.0
      %1455 = vmatprep.subr.mxu0 0.0
      %1456 = vmatpush1.msra.mxu0 0.0
      %1457 = vmatprep.subr.mxu0 0.0
      %1458 = vmatpush1.msra.mxu0 0.0
      %1459 = vmatprep.subr.mxu0 0.0
      %1460 = vmatpush1.msra.mxu0 0.0
      %1461 = vmatprep.subr.mxu0 0.0
      %1462 = vmatpush1.msra.mxu0 0.0
      %1463 = vmatprep.subr.mxu0 0.0
      %1464 = vmatpush1.msra.mxu0 0.0
      %1465 = vmatprep.subr.mxu0 0.0
      %1466 = vmatpush1.msra.mxu0 0.0
      %1467 = vmatprep.subr.mxu0 0.0
      %1468 = vmatpush1.msra.mxu0 0.0
      %1469 = vmatprep.subr.mxu0 0.0
      %1470 = vmatpush1.msra.mxu0 0.0
      %1471 = vmatprep.subr.mxu0 0.0
      %1472 = vmatpush1.msra.mxu0 0.0
      %1473 = vmatprep.subr.mxu0 0.0
      %1474 = vmatpush1.msra.mxu0 0.0
      %1475 = vmatprep.subr.mxu0 0.0
      %1476 = vmatpush1.msra.mxu0 0.0
      %1477 = vmatprep.subr.mxu0 0.0
      %1478 = vmatpush1.msra.mxu0 0.0
      %1479 = vmatprep.subr.mxu0 0.0
      %1480 = vmatpush1.msra.mxu0 0.0
      %1481 = vmatprep.subr.mxu0 0.0
      %1482 = vmatpush1.msra.mxu0 0.0
      %1483 = vmatprep.subr.mxu0 0.0
      %1484 = vmatpush1.msra.mxu0 0.0
      %1485 = vmatprep.subr.mxu0 0.0
      %1486 = vmatpush1.msra.mxu0 0.0
      %1487 = vmatprep.subr.mxu0 0.0
      %1488 = vmatpush1.msra.mxu0 0.0
      %1489 = vmatprep.mubr.f32.mxu0 0.0
      %1490 = vmatmul.mubr.f32.gmra.mrb[0].mxu0 %v1423
      %v1491 = vpop.f32.mrb[0].mxu0
      %v1492 = vadd.f32 0.0, %v1491
      %v1493 = vpop.f32.mrb[0].mxu0
      %1494 = vdwg.mxu0
      %1495 = vmatprep.subr.mxu0 0.0
      %1496 = vmatpush1.msra.mxu0 %v890
      %1497 = vmatprep.subr.mxu0 0.0
      %1498 = vmatpush1.msra.mxu0 0.0
      %1499 = vmatprep.subr.mxu0 0.0
      %1500 = vmatpush1.msra.mxu0 0.0
      %1501 = vmatprep.subr.mxu0 0.0
      %1502 = vmatpush1.msra.mxu0 0.0
      %1503 = vmatprep.subr.mxu0 0.0
      %1504 = vmatpush1.msra.mxu0 0.0
      %1505 = vmatprep.subr.mxu0 0.0
      %1506 = vmatpush1.msra.mxu0 0.0
      %1507 = vmatprep.subr.mxu0 0.0
      %1508 = vmatpush1.msra.mxu0 0.0
      %1509 = vmatprep.subr.mxu0 0.0
      %1510 = vmatpush1.msra.mxu0 0.0
      %1511 = vmatprep.subr.mxu0 0.0
      %1512 = vmatpush1.msra.mxu0 0.0
      %1513 = vmatprep.subr.mxu0 0.0
      %1514 = vmatpush1.msra.mxu0 0.0
      %1515 = vmatprep.subr.mxu0 0.0
      %1516 = vmatpush1.msra.mxu0 0.0
      %1517 = vmatprep.subr.mxu0 0.0
      %1518 = vmatpush1.msra.mxu0 0.0
      %1519 = vmatprep.subr.mxu0 0.0
      %1520 = vmatpush1.msra.mxu0 0.0
      %1521 = vmatprep.subr.mxu0 0.0
      %1522 = vmatpush1.msra.mxu0 0.0
      %1523 = vmatprep.subr.mxu0 0.0
      %1524 = vmatpush1.msra.mxu0 0.0
      %1525 = vmatprep.subr.mxu0 0.0
      %1526 = vmatpush1.msra.mxu0 0.0
      %1527 = vmatprep.subr.mxu0 0.0
      %1528 = vmatpush1.msra.mxu0 0.0
      %1529 = vmatprep.subr.mxu0 0.0
      %1530 = vmatpush1.msra.mxu0 0.0
      %1531 = vmatprep.subr.mxu0 0.0
      %1532 = vmatpush1.msra.mxu0 0.0
      %1533 = vmatprep.subr.mxu0 0.0
      %1534 = vmatpush1.msra.mxu0 0.0
      %1535 = vmatprep.subr.mxu0 0.0
      %1536 = vmatpush1.msra.mxu0 0.0
      %1537 = vmatprep.subr.mxu0 0.0
      %1538 = vmatpush1.msra.mxu0 0.0
      %1539 = vmatprep.subr.mxu0 0.0
      %1540 = vmatpush1.msra.mxu0 0.0
      %1541 = vmatprep.subr.mxu0 0.0
      %1542 = vmatpush1.msra.mxu0 0.0
      %1543 = vmatprep.subr.mxu0 0.0
      %1544 = vmatpush1.msra.mxu0 0.0
      %1545 = vmatprep.subr.mxu0 0.0
      %1546 = vmatpush1.msra.mxu0 0.0
      %1547 = vmatprep.subr.mxu0 0.0
      %1548 = vmatpush1.msra.mxu0 0.0
      %1549 = vmatprep.subr.mxu0 0.0
      %1550 = vmatpush1.msra.mxu0 0.0
      %1551 = vmatprep.subr.mxu0 0.0
      %1552 = vmatpush1.msra.mxu0 0.0
      %1553 = vmatprep.subr.mxu0 0.0
      %1554 = vmatpush1.msra.mxu0 0.0
      %1555 = vmatprep.subr.mxu0 0.0
      %1556 = vmatpush1.msra.mxu0 0.0
      %1557 = vmatprep.subr.mxu0 0.0
      %1558 = vmatpush1.msra.mxu0 0.0
      %1559 = vmatprep.mubr.f32.mxu0 0.0
      %1560 = vmatmul.mubr.f32.gmra.mrb[0].mxu0 %v1423
      %v1561 = vpop.f32.mrb[0].mxu0
      %v1562 = vadd.f32 0.0, %v1561
      %v1563 = vpop.f32.mrb[0].mxu0
      %1564 = vdwg.mxu0
      %1565 = vmatprep.subr.mxu0 0.0
      %1566 = vmatpush1.msra.mxu0 %v891
      %1567 = vmatprep.subr.mxu0 0.0
      %1568 = vmatpush1.msra.mxu0 0.0
      %1569 = vmatprep.subr.mxu0 0.0
      %1570 = vmatpush1.msra.mxu0 0.0
      %1571 = vmatprep.subr.mxu0 0.0
      %1572 = vmatpush1.msra.mxu0 0.0
      %1573 = vmatprep.subr.mxu0 0.0
      %1574 = vmatpush1.msra.mxu0 0.0
      %1575 = vmatprep.subr.mxu0 0.0
      %1576 = vmatpush1.msra.mxu0 0.0
      %1577 = vmatprep.subr.mxu0 0.0
      %1578 = vmatpush1.msra.mxu0 0.0
      %1579 = vmatprep.subr.mxu0 0.0
      %1580 = vmatpush1.msra.mxu0 0.0
      %1581 = vmatprep.subr.mxu0 0.0
      %1582 = vmatpush1.msra.mxu0 0.0
      %1583 = vmatprep.subr.mxu0 0.0
      %1584 = vmatpush1.msra.mxu0 0.0
      %1585 = vmatprep.subr.mxu0 0.0
      %1586 = vmatpush1.msra.mxu0 0.0
      %1587 = vmatprep.subr.mxu0 0.0
      %1588 = vmatpush1.msra.mxu0 0.0
      %1589 = vmatprep.subr.mxu0 0.0
      %1590 = vmatpush1.msra.mxu0 0.0
      %1591 = vmatprep.subr.mxu0 0.0
      %1592 = vmatpush1.msra.mxu0 0.0
      %1593 = vmatprep.subr.mxu0 0.0
      %1594 = vmatpush1.msra.mxu0 0.0
      %1595 = vmatprep.subr.mxu0 0.0
      %1596 = vmatpush1.msra.mxu0 0.0
      %1597 = vmatprep.subr.mxu0 0.0
      %1598 = vmatpush1.msra.mxu0 0.0
      %1599 = vmatprep.subr.mxu0 0.0
      %1600 = vmatpush1.msra.mxu0 0.0
      %1601 = vmatprep.subr.mxu0 0.0
      %1602 = vmatpush1.msra.mxu0 0.0
      %1603 = vmatprep.subr.mxu0 0.0
      %1604 = vmatpush1.msra.mxu0 0.0
      %1605 = vmatprep.subr.mxu0 0.0
      %1606 = vmatpush1.msra.mxu0 0.0
      %1607 = vmatprep.subr.mxu0 0.0
      %1608 = vmatpush1.msra.mxu0 0.0
      %1609 = vmatprep.subr.mxu0 0.0
      %1610 = vmatpush1.msra.mxu0 0.0
      %1611 = vmatprep.subr.mxu0 0.0
      %1612 = vmatpush1.msra.mxu0 0.0
      %1613 = vmatprep.subr.mxu0 0.0
      %1614 = vmatpush1.msra.mxu0 0.0
      %1615 = vmatprep.subr.mxu0 0.0
      %1616 = vmatpush1.msra.mxu0 0.0
      %1617 = vmatprep.subr.mxu0 0.0
      %1618 = vmatpush1.msra.mxu0 0.0
      %1619 = vmatprep.subr.mxu0 0.0
      %1620 = vmatpush1.msra.mxu0 0.0
      %1621 = vmatprep.subr.mxu0 0.0
      %1622 = vmatpush1.msra.mxu0 0.0
      %1623 = vmatprep.subr.mxu0 0.0
      %1624 = vmatpush1.msra.mxu0 0.0
      %1625 = vmatprep.subr.mxu0 0.0
      %1626 = vmatpush1.msra.mxu0 0.0
      %1627 = vmatprep.subr.mxu0 0.0
      %1628 = vmatpush1.msra.mxu0 0.0
      %1629 = vmatprep.mubr.f32.mxu0 0.0
      %1630 = vmatmul.mubr.f32.gmra.mrb[0].mxu0 %v1423
      %v1631 = vpop.f32.mrb[0].mxu0
      %v1632 = vadd.f32 0.0, %v1631
      %v1633 = vpop.f32.mrb[0].mxu0
      %1634 = vdwg.mxu0
      %1635 = vmatprep.subr.mxu0 0.0
      %1636 = vmatpush1.msra.mxu0 %v892
      %1637 = vmatprep.subr.mxu0 0.0
      %1638 = vmatpush1.msra.mxu0 0.0
      %1639 = vmatprep.subr.mxu0 0.0
      %1640 = vmatpush1.msra.mxu0 0.0
      %1641 = vmatprep.subr.mxu0 0.0
      %1642 = vmatpush1.msra.mxu0 0.0
      %1643 = vmatprep.subr.mxu0 0.0
      %1644 = vmatpush1.msra.mxu0 0.0
      %1645 = vmatprep.subr.mxu0 0.0
      %1646 = vmatpush1.msra.mxu0 0.0
      %1647 = vmatprep.subr.mxu0 0.0
      %1648 = vmatpush1.msra.mxu0 0.0
      %1649 = vmatprep.subr.mxu0 0.0
      %1650 = vmatpush1.msra.mxu0 0.0
      %1651 = vmatprep.subr.mxu0 0.0
      %1652 = vmatpush1.msra.mxu0 0.0
      %1653 = vmatprep.subr.mxu0 0.0
      %1654 = vmatpush1.msra.mxu0 0.0
      %1655 = vmatprep.subr.mxu0 0.0
      %1656 = vmatpush1.msra.mxu0 0.0
      %1657 = vmatprep.subr.mxu0 0.0
      %1658 = vmatpush1.msra.mxu0 0.0
      %1659 = vmatprep.subr.mxu0 0.0
      %1660 = vmatpush1.msra.mxu0 0.0
      %1661 = vmatprep.subr.mxu0 0.0
      %1662 = vmatpush1.msra.mxu0 0.0
      %1663 = vmatprep.subr.mxu0 0.0
      %1664 = vmatpush1.msra.mxu0 0.0
      %1665 = vmatprep.subr.mxu0 0.0
      %1666 = vmatpush1.msra.mxu0 0.0
      %1667 = vmatprep.subr.mxu0 0.0
      %1668 = vmatpush1.msra.mxu0 0.0
      %1669 = vmatprep.subr.mxu0 0.0
      %1670 = vmatpush1.msra.mxu0 0.0
      %1671 = vmatprep.subr.mxu0 0.0
      %1672 = vmatpush1.msra.mxu0 0.0
      %1673 = vmatprep.subr.mxu0 0.0
      %1674 = vmatpush1.msra.mxu0 0.0
      %1675 = vmatprep.subr.mxu0 0.0
      %1676 = vmatpush1.msra.mxu0 0.0
      %1677 = vmatprep.subr.mxu0 0.0
      %1678 = vmatpush1.msra.mxu0 0.0
      %1679 = vmatprep.subr.mxu0 0.0
      %1680 = vmatpush1.msra.mxu0 0.0
      %1681 = vmatprep.subr.mxu0 0.0
      %1682 = vmatpush1.msra.mxu0 0.0
      %1683 = vmatprep.subr.mxu0 0.0
      %1684 = vmatpush1.msra.mxu0 0.0
      %1685 = vmatprep.subr.mxu0 0.0
      %1686 = vmatpush1.msra.mxu0 0.0
      %1687 = vmatprep.subr.mxu0 0.0
      %1688 = vmatpush1.msra.mxu0 0.0
      %1689 = vmatprep.subr.mxu0 0.0
      %1690 = vmatpush1.msra.mxu0 0.0
      %1691 = vmatprep.subr.mxu0 0.0
      %1692 = vmatpush1.msra.mxu0 0.0
      %1693 = vmatprep.subr.mxu0 0.0
      %1694 = vmatpush1.msra.mxu0 0.0
      %1695 = vmatprep.subr.mxu0 0.0
      %1696 = vmatpush1.msra.mxu0 0.0
      %1697 = vmatprep.subr.mxu0 0.0
      %1698 = vmatpush1.msra.mxu0 0.0
      %1699 = vmatprep.mubr.f32.mxu0 0.0
      %1700 = vmatmul.mubr.f32.gmra.mrb[0].mxu0 %v1423
      %v1701 = vpop.f32.mrb[0].mxu0
      %v1702 = vadd.f32 0.0, %v1701
      %v1703 = vpop.f32.mrb[0].mxu0
      %1704 = vdwg.mxu0
      %v1709 = vrot.slane %v1562, 7
      %vm1710 = vcmask 1041409
      %v1711 = vsel %vm1710, %v1709, %v1492
      %v1712 = vrot.slane %v1632, 6
      %vm1713 = vcmask 1042434
      %v1714 = vsel %vm1713, %v1712, %v1711
      %v1715 = vrot.slane %v1702, 5
      %vm1716 = vcmask 1043459
      %v1717 = vsel %vm1716, %v1715, %v1714
      %v1719 = vrot.slane %v1492, 1
      %v1720 = vsel %vm1710, %v1562, %v1719
      %v1721 = vrot.slane %v1632, 7
      %v1722 = vsel %vm1713, %v1721, %v1720
      %v1723 = vrot.slane %v1702, 6
      %v1724 = vsel %vm1716, %v1723, %v1722
      %1725 = vrot.lane.b32.xlu0 %v1724, 16
      %v1726 = vpop.permute.xlu0 %1725
      %v1728 = vrot.slane %v1492, 2
      %v1729 = vrot.slane %v1562, 1
      %v1730 = vsel %vm1710, %v1729, %v1728
      %v1731 = vsel %vm1713, %v1632, %v1730
      %v1732 = vrot.slane %v1702, 7
      %v1733 = vsel %vm1716, %v1732, %v1731
      %1734 = vrot.lane.b32.xlu0 %v1733, 32
      %v1735 = vpop.permute.xlu0 %1734
      %v1737 = vrot.slane %v1492, 3
      %v1738 = vrot.slane %v1562, 2
      %v1739 = vsel %vm1710, %v1738, %v1737
      %v1740 = vrot.slane %v1632, 1
      %v1741 = vsel %vm1713, %v1740, %v1739
      %v1742 = vsel %vm1716, %v1702, %v1741
      %1743 = vrot.lane.b32.xlu0 %v1742, 48
      %v1744 = vpop.permute.xlu0 %1743
      %v1746 = vrot.slane %v1492, 4
      %v1747 = vrot.slane %v1562, 3
      %v1748 = vsel %vm1710, %v1747, %v1746
      %v1749 = vrot.slane %v1632, 2
      %v1750 = vsel %vm1713, %v1749, %v1748
      %v1751 = vrot.slane %v1702, 1
      %v1752 = vsel %vm1716, %v1751, %v1750
      %1753 = vrot.lane.b32.xlu0 %v1752, 64
      %v1754 = vpop.permute.xlu0 %1753
      %v1756 = vrot.slane %v1492, 5
      %v1757 = vrot.slane %v1562, 4
      %v1758 = vsel %vm1710, %v1757, %v1756
      %v1759 = vrot.slane %v1632, 3
      %v1760 = vsel %vm1713, %v1759, %v1758
      %v1761 = vrot.slane %v1702, 2
      %v1762 = vsel %vm1716, %v1761, %v1760
      %1763 = vrot.lane.b32.xlu0 %v1762, 80
      %v1764 = vpop.permute.xlu0 %1763
      %v1766 = vrot.slane %v1492, 6
      %v1767 = vrot.slane %v1562, 5
      %v1768 = vsel %vm1710, %v1767, %v1766
      %v1769 = vrot.slane %v1632, 4
      %v1770 = vsel %vm1713, %v1769, %v1768
      %v1771 = vrot.slane %v1702, 3
      %v1772 = vsel %vm1716, %v1771, %v1770
      %1773 = vrot.lane.b32.xlu0 %v1772, 96
      %v1774 = vpop.permute.xlu0 %1773
      %v1776 = vrot.slane %v1492, 7
      %v1777 = vrot.slane %v1562, 6
      %v1778 = vsel %vm1710, %v1777, %v1776
      %v1779 = vrot.slane %v1632, 5
      %v1780 = vsel %vm1713, %v1779, %v1778
      %v1781 = vrot.slane %v1702, 4
      %v1782 = vsel %vm1716, %v1781, %v1780
      %1783 = vrot.lane.b32.xlu0 %v1782, 112
      %v1784 = vpop.permute.xlu0 %1783
      %v1786 = vsel %vm602, %v1717, %v1726
      %v1787 = vsel %vm327, %v1786, %v1735
      %vm1788 = vcmask 392192
      %v1789 = vsel %vm1788, %v1787, %v1744
      %vm1790 = vcmask 523264
      %v1791 = vsel %vm1790, %v1789, %v1754
      %vm1792 = vcmask 654336
      %v1793 = vsel %vm1792, %v1791, %v1764
      %vm1794 = vcmask 785408
      %v1795 = vsel %vm1794, %v1793, %v1774
      %vm1796 = vcmask 916480
      %v1797 = vsel %vm1796, %v1795, %v1784
      %v1798 = vld [vmem:[%s4] sm:$0x1]
      %v1800 = vlaneseq
      %v1801 = vshrl.u32 %v1800, 7
      %v1802 = vsub.s32 0, %v1801
      %v1803 = vrot.slane %v1798, %v1802
      %v1805 = vadd.f32 %v1797, %v1803
      %vm1806 = vcmask 1043456
      %v1807 = vsel %vm1806, %v1805, 0.0
      %1808 = vadd.xlane.f32.xlu0 %v1807
      %v1809 = vpop.xlane.xlu0 %1808
      %v1810 = vrot.slane %v1809, 4
      %v1811 = vadd.f32 %v1809, %v1810
      %v1812 = vrot.slane %v1811, 2
      %v1813 = vadd.f32 %v1811, %v1812
      %v1814 = vrot.slane %v1813, 1
      %v1815 = vadd.f32 %v1813, %v1814
      %s1816 = vtos %v1815
      %s1817 = smul.f32 %s1816, 0.001953125
      %v1818 = vmul.f32 %v1805, %v1805
      %v1819 = vsel %vm1806, %v1818, 0.0
      %1820 = vadd.xlane.f32.xlu0 %v1819
      %v1821 = vpop.xlane.xlu0 %1820
      %v1822 = vrot.slane %v1821, 4
      %v1823 = vadd.f32 %v1821, %v1822
      %v1824 = vrot.slane %v1823, 2
      %v1825 = vadd.f32 %v1823, %v1824
      %v1826 = vrot.slane %v1825, 1
      %v1827 = vadd.f32 %v1825, %v1826
      %s1828 = vtos %v1827
      %s1829 = smul.f32 %s1828, 0.001953125
      %s1830 = smul.f32 %s1817, %s1817
      %s1831 = ssub.f32 %s1829, %s1830
      %s1832 = sadd.f32 %s1831, 1e-05
      %v1833 = vstv %s1832
      %v1834 = vrsqrt.pop %v1833
      %s1835 = vtos %v1834
      %v1836 = vstv %s1817
      %v1837 = vsub.f32 %v1805, %v1836
      %v1838 = vstv %s1835
      %v1839 = vmul.f32 %v1837, %v1838
      %v1840 = vld [vmem:[%s5] sm:$0xf]
      %v1841 = vmul.f32 %v1839, %v1840
      %v1842 = vld [vmem:[%s6] sm:$0xf]
      %v1843 = vadd.f32 %v1841, %v1842
      %v1844 = vtanh.pop %v1843
      %v1845 = vld [vmem:[%s316] sm:$0xf]
      %v1846 = vadd.f32 %v1844, %v1845
      %1847 = vst [vmem:[%s320] sm:$0xf] %v1846
      %p1848 = scmp.lt.s32.totalorder %s19, 1
      %s1849 = scalar_select %p1848, %s19, 1
      %s1850 = smul.addr %s1849, 4
      %s1851 = scalar_lea.vmem %s8, %s1850
      // Predicated region
      $region53: #{residual_graph_convolution_forward.1} parent=51 // pred_check
        %p1852 = pneg %p215
      $region54: #{residual_graph_convolution_forward.1} parent=51 // pred_check_branch
        %1854 = sbr.rel (%p1852) target = $region56
      $region55: #{residual_graph_convolution_forward.1} parent=51 // pred_region
        _
      $region56: #{residual_graph_convolution_forward.1} parent=51 // pred_fallthru
        _
    $region52: #{residual_graph_convolution_forward.1} parent=5 // pred_fallthru
      _
    %p1855 = scmp.le.s32.totalorder 2, %s14
    // Predicated region
    $region57: #{residual_graph_convolution_forward.1} parent=5 // pred_check
      %p1856 = pneg %p1855
    $region58: #{residual_graph_convolution_forward.1} parent=5 // pred_check_branch
      %1858 = sbr.rel (%p1856) target = $region60
    $region59: #{residual_graph_convolution_forward.1} parent=5 // pred_region
      %s1859 = ssub.s32 %s14, 2
      // Predicated region
      $region61: #{residual_graph_convolution_forward.1} parent=59 // pred_check
        %p1860 = pneg %p221
      $region62: #{residual_graph_convolution_forward.1} parent=59 // pred_check_branch
        %1862 = sbr.rel (%p1860) target = $region64
      $region63: #{residual_graph_convolution_forward.1} parent=59 // pred_region
        %p1863 = scmp.lt.s32.totalorder %s20, 1
        %s1864 = scalar_select %p1863, %s20, 1
        %s1865 = smul.addr %s1864, 4
        %s1866 = scalar_lea.vmem %s8, %s1865
      $region64: #{residual_graph_convolution_forward.1} parent=59 // pred_fallthru
        _
    $region60: #{residual_graph_convolution_forward.1} parent=5 // pred_fallthru
      _
  $region6: #{residual_graph_convolution_forward.1} parent=0 // loop_footer
    %s18 = sadd.s32 1, %s14
  $region7: #{residual_graph_convolution_forward.1} parent=0 // loop_footer_branch
    %13 = sbr.rel target = $region3
  $region8: #{residual_graph_convolution_forward.1} parent=0 // loop_exit
    _

</llo_original>
